<compile_context>
chip_gen: v7x
topology: tpu7x:2x2x1
jax: 0.10.0
libtpu: 0.0.40
codegen_flags: <defaults>
</compile_context>

<pallas_src>
import jax
import jax.numpy as jnp
from jax.experimental import pallas as pl
from jax.experimental.pallas import tpu as pltpu


def _make_kernel(R, W, TS, BP, src_row):
    """R: padded rows (incl. halos); W: padded lane width; TS: steps/chunk."""

    def kernel(inj_ref, coef_ref, pmask_ref, y_ref, h1_ref, h2_ref):
        # h1 = h2 = 0 at the very first time step (torch.zeros in WaveRNN.forward).
        @pl.when(pl.program_id(0) == 0)
        def _():
            h1_ref[...] = jnp.zeros_like(h1_ref)
            h2_ref[...] = jnp.zeros_like(h2_ref)

        # Time-invariant coefficient fields (zero outside the field region).
        coef_h1 = coef_ref[0]      # 2/dt^2 / denom
        coef_h2 = coef_ref[1]      # (1/dt^2 - b/(2dt)) / denom
        coef_lap = coef_ref[2]     # c^2 / (h^2 * denom)
        pmask = pmask_ref[...]     # (BP, R, W) one-hot probe masks

        # One-hot source-row mask (static row) and one-hot time-lane ids.
        row_ids = jax.lax.broadcasted_iota(jnp.int32, (R, W), 0)
        src_mask = (row_ids == src_row).astype(jnp.float32)
        lane_ids = jax.lax.broadcasted_iota(jnp.int32, (1, TS), 1)

        # Recurrent state lives in registers inside the chunk.
        h1 = h1_ref[...]
        h2 = h2_ref[...]
        acc = jnp.zeros((BP, TS), jnp.float32)

        for s in range(TS):        # fully unrolled; all indices static
            # 5-point laplacian via XLU rolls on the zero-halo aligned slab.
            # (both +1 and -1 shifts are summed, so roll direction is irrelevant;
            #  wrap-around always lands on zero halo/padding rows/columns.)
            up = pltpu.roll(h1, 1, 0)
            down = pltpu.roll(h1, R - 1, 0)
            left = pltpu.roll(h1, 1, 1)
            right = pltpu.roll(h1, W - 1, 1)
            lap = (up + down) + (left + right) - 4.0 * h1

            # WaveCell leapfrog update (divide folded into coef_*; exactly zero
            # outside the field region, which keeps halos/padding zero forever).
            y_new = coef_h1 * h1 - coef_h2 * h2 + coef_lap * lap

            # WaveSource: merged one-hot-row injection (no separate store).
            y_new = y_new + src_mask * inj_ref[pl.ds(s, 1), :]

            # WaveIntensityProbe readout: one-hot mask multiply + reduce (VPU/XLU).
            picked = y_new[None, :, :] * pmask         # (BP, R, W)
            v = jnp.sum(picked, axis=1)                # (BP, W)
            v = jnp.sum(v, axis=1, keepdims=True)      # (BP, 1)
            acc = acc + v * (lane_ids == s).astype(jnp.float32)

            h2 = h1
            h1 = y_new

        # Persist recurrent state for the next chunk: one store per field/chunk.
        h1_ref[...] = h1
        h2_ref[...] = h2
        # Intensity = value^2; one lane-dense (BP, TS) store per chunk.
        y_ref[...] = acc * acc

    return kernel


def wave_rnn_forward(x, c, b, src_pos, probe_pos, dt, hgrid):
    """x: (B, T) source amplitudes.  Returns y: (B, T, P) probe intensities."""
    B, T = x.shape
    Nx, Ny = c.shape
    P = len(probe_pos)
    BP = B * P

    # Packed, 128-lane-aligned layout: per-batch stripe = Ny field columns +
    # one always-zero separator column; one zero halo row above and below the
    # field rows; rows padded to a sublane multiple.
    Sb = Ny + 1
    W = max(128, ((B * Sb + 127) // 128) * 128)
    R = ((Nx + 2 + 7) // 8) * 8

    dt = float(dt)
    hgrid = float(hgrid)
    inv_dt2 = 1.0 / (dt * dt)
    hod = 0.5 / dt
    inv_h2 = 1.0 / (hgrid * hgrid)

    c = c.astype(jnp.float32)
    b = b.astype(jnp.float32)
    inv_den = 1.0 / (inv_dt2 + b * hod)
    coef_h1 = (2.0 * inv_dt2) * inv_den
    coef_h2 = (inv_dt2 - b * hod) * inv_den
    coef_lap = (c * c) * inv_den * inv_h2

    def pack(field):               # (Nx, Ny) -> (R, W), zero outside field region
        out = jnp.zeros((R, W), jnp.float32)
        for bi in range(B):
            out = out.at[1:1 + Nx, bi * Sb: bi * Sb + Ny].set(field)
        return out

    # Single coefficient input (one BlockSpec / buffer pair instead of three).
    coefs = jnp.stack([pack(coef_h1), pack(coef_h2), pack(coef_lap)], axis=0)

    # Time chunking: TS leapfrog steps per grid step.
    TS = T if T <= 128 else 128
    n_chunks = -(-T // TS)
    T_pad = n_chunks * TS

    # Source rows, pre-scattered onto the packed lane layout:
    #   inj[t, bi*Sb + sj] = x[bi, t]   (rows >= T are zero padding)
    si, sj = int(src_pos[0]), int(src_pos[1])
    inj = jnp.zeros((T_pad, W), jnp.float32)
    for bi in range(B):
        inj = inj.at[:T, bi * Sb + sj].set(x[bi, :].astype(jnp.float32))

    # One-hot probe masks on the packed layout.
    pmask = jnp.zeros((BP, R, W), jnp.float32)
    for bi in range(B):
        for p, (pi, pj) in enumerate(probe_pos):
            pmask = pmask.at[bi * P + p, 1 + int(pi), bi * Sb + int(pj)].set(1.0)

    kernel = _make_kernel(R, W, TS, BP, 1 + si)

    y_flat = pl.pallas_call(
        kernel,
        out_shape=jax.ShapeDtypeStruct((BP, T_pad), jnp.float32),
        grid_spec=pltpu.PrefetchScalarGridSpec(
            num_scalar_prefetch=0,
            grid=(n_chunks,),                                    # chunked time loop
            in_specs=[
                pl.BlockSpec((TS, W), lambda tc: (tc, 0)),       # source rows
                pl.BlockSpec((3, R, W), lambda tc: (0, 0, 0)),   # coefficients
                pl.BlockSpec((BP, R, W), lambda tc: (0, 0, 0)),  # probe masks
            ],
            out_specs=pl.BlockSpec((BP, TS), lambda tc: (0, tc)),
            scratch_shapes=[
                pltpu.VMEM((R, W), jnp.float32),                 # h1 (across chunks)
                pltpu.VMEM((R, W), jnp.float32),                 # h2 (across chunks)
            ],
        ),
        compiler_params=pltpu.CompilerParams(
            dimension_semantics=("arbitrary",),                  # recurrent in time
        ),
    )(inj, coefs, pmask)

    y = y_flat[:, :T].reshape(B, P, T)                           # drop time padding
    return jnp.transpose(y, (0, 2, 1))                           # (B, T, P)


def wave_rnn_reference(x, c, b, src_mask, probe_masks, dt, hgrid):
    """Pure-JAX reference mirroring the PyTorch WaveRNN loop semantics."""
    B, T = x.shape
    inv_dt2 = 1.0 / (dt * dt)
    half_over_dt = 0.5 / dt
    inv_h2 = 1.0 / (hgrid * hgrid)
    h1 = jnp.zeros((B,) + c.shape, jnp.float32)
    h2 = jnp.zeros_like(h1)
    ys = []
    for t in range(T):
        p = jnp.pad(h1, ((0, 0), (1, 1), (1, 1)))
        lap = (p[:, :-2, 1:-1] + p[:, 2:, 1:-1] + p[:, 1:-1, :-2] + p[:, 1:-1, 2:]
               - 4.0 * h1) * inv_h2
        y_new = ((2.0 * inv_dt2) * h1
                 - (inv_dt2 - b * half_over_dt)[None] * h2
                 + (c * c)[None] * lap) / (inv_dt2 + b * half_over_dt)[None]
        h2 = h1
        h1 = y_new + src_mask[None] * x[:, t][:, None, None]
        vals = jnp.sum(h1[:, None] * probe_masks[None], axis=(2, 3))
        ys.append(vals * vals)
    return jnp.stack(ys, axis=1)                                 # (B, T, P)


if __name__ == "__main__":
    B, T, Nx, Ny, P = 2, 16, 16, 16, 2
    dt, hgrid = 0.5, 1.0

    key = jax.random.PRNGKey(0)
    x = jax.random.normal(key, (B, T), dtype=jnp.float32)        # source time series

    # Deterministic "cell.geom" parameters: wave-speed field c and damping b.
    ii = jnp.arange(Nx, dtype=jnp.float32)[:, None]
    jj = jnp.arange(Ny, dtype=jnp.float32)[None, :]
    c = (1.0 + 0.05 * jnp.sin(0.3 * ii) * jnp.cos(0.2 * jj)).astype(jnp.float32)
    ei = jnp.arange(Nx)[:, None]
    ej = jnp.arange(Ny)[None, :]
    edge = jnp.minimum(jnp.minimum(ei, Nx - 1 - ei), jnp.minimum(ej, Ny - 1 - ej))
    b = jnp.where(edge < 2, 0.3, 0.0).astype(jnp.float32)        # boundary damping

    # One point source, two intensity probes.
    src_pos = (Nx // 2, Ny // 4)
    probe_pos = [(Nx // 2, (3 * Ny) // 4), (Nx // 4, Ny // 2)]

    src_mask = jnp.zeros((Nx, Ny), jnp.float32).at[src_pos[0], src_pos[1]].set(1.0)
    probe_masks = jnp.zeros((P, Nx, Ny), jnp.float32)
    for p, (pi, pj) in enumerate(probe_pos):
        probe_masks = probe_masks.at[p, pi, pj].set(1.0)

    y = wave_rnn_forward(x, c, b, src_pos, probe_pos, dt, hgrid)
    y = jax.block_until_ready(y)

    y_ref = wave_rnn_reference(x, c, b, src_mask, probe_masks, dt, hgrid)

    assert y.shape == (B, T, P), y.shape
    assert bool(jnp.allclose(y, y_ref, rtol=2e-3, atol=1e-5)), \
        f"mismatch: max abs diff {jnp.max(jnp.abs(y - y_ref))}"

    print("KERNEL_OK")
</pallas_src>

<mosaic_0001>
module attributes {stable_mosaic.version = 11 : i64} {
  func.func @kernel(%arg0: i32, %arg1: memref<16x128xf32, #tpu.memory_space<vmem>>, %arg2: memref<3x24x128xf32, #tpu.memory_space<vmem>>, %arg3: memref<4x24x128xf32, #tpu.memory_space<vmem>>, %arg4: memref<4x16xf32, #tpu.memory_space<vmem>>, %arg5: memref<24x128xf32, #tpu.memory_space<vmem>>, %arg6: memref<24x128xf32, #tpu.memory_space<vmem>>) attributes {dimension_semantics = [#tpu.dimension_semantics<arbitrary>], iteration_bounds = array<i64: 1>, scalar_prefetch = 0 : i64, scratch_operands = 2 : i64, tpu.core_type = #tpu.core_type<tc>, window_params = [{transform_indices = @transform_0, window_bounds = array<i64: 16, 128>}, {pipeline_mode = #tpu.pipeline_mode<synchronous>, transform_indices = @transform_1, window_bounds = array<i64: 3, 24, 128>}, {pipeline_mode = #tpu.pipeline_mode<synchronous>, transform_indices = @transform_2, window_bounds = array<i64: 4, 24, 128>}, {transform_indices = @transform_3, window_bounds = array<i64: 4, 16>}]} {
    %c0_i32 = arith.constant 0 : i32
    %0 = arith.cmpi eq, %arg0, %c0_i32 : i32
    %1 = arith.extui %0 : i1 to i32
    %c0_i32_0 = arith.constant 0 : i32
    %2 = arith.cmpi ne, %1, %c0_i32_0 : i32
    scf.if %2 {
      %cst_151 = arith.constant 0.000000e+00 : f32
      %551 = vector.broadcast %cst_151 : f32 to vector<24x128xf32>
      %c0_152 = arith.constant 0 : index
      %c0_153 = arith.constant 0 : index
      %552 = vector.load %arg5[%c0_152, %c0_153] : memref<24x128xf32, #tpu.memory_space<vmem>>, vector<24x128xf32>
      tpu.vector_store %arg5[%c0_152, %c0_153], %551 {strides = array<i32>} : memref<24x128xf32, #tpu.memory_space<vmem>>, vector<24x128xf32>,
      %cst_154 = arith.constant 0.000000e+00 : f32
      %553 = vector.broadcast %cst_154 : f32 to vector<24x128xf32>
      %c0_155 = arith.constant 0 : index
      %c0_156 = arith.constant 0 : index
      %554 = vector.load %arg6[%c0_155, %c0_156] : memref<24x128xf32, #tpu.memory_space<vmem>>, vector<24x128xf32>
      tpu.vector_store %arg6[%c0_155, %c0_156], %553 {strides = array<i32>} : memref<24x128xf32, #tpu.memory_space<vmem>>, vector<24x128xf32>,
    } else {
    }
    %c0 = arith.constant 0 : index
    %c0_1 = arith.constant 0 : index
    %c0_2 = arith.constant 0 : index
    %3 = vector.load %arg2[%c0, %c0_1, %c0_2] : memref<3x24x128xf32, #tpu.memory_space<vmem>>, vector<1x24x128xf32>
    %4 = vector.shape_cast %3 : vector<1x24x128xf32> to vector<24x128xf32>
    %c1 = arith.constant 1 : index
    %c0_3 = arith.constant 0 : index
    %c0_4 = arith.constant 0 : index
    %5 = vector.load %arg2[%c1, %c0_3, %c0_4] : memref<3x24x128xf32, #tpu.memory_space<vmem>>, vector<1x24x128xf32>
    %6 = vector.shape_cast %5 : vector<1x24x128xf32> to vector<24x128xf32>
    %c2 = arith.constant 2 : index
    %c0_5 = arith.constant 0 : index
    %c0_6 = arith.constant 0 : index
    %7 = vector.load %arg2[%c2, %c0_5, %c0_6] : memref<3x24x128xf32, #tpu.memory_space<vmem>>, vector<1x24x128xf32>
    %8 = vector.shape_cast %7 : vector<1x24x128xf32> to vector<24x128xf32>
    %c0_7 = arith.constant 0 : index
    %c0_8 = arith.constant 0 : index
    %c0_9 = arith.constant 0 : index
    %9 = vector.load %arg3[%c0_7, %c0_8, %c0_9] : memref<4x24x128xf32, #tpu.memory_space<vmem>>, vector<4x24x128xf32>
    %10 = tpu.iota {dimensions = array<i32: 0>} : vector<24x128xi32>
    %c9_i32 = arith.constant 9 : i32
    %11 = vector.broadcast %c9_i32 : i32 to vector<24x128xi32>
    %12 = arith.cmpi eq, %10, %11 : vector<24x128xi32>
    %13 = arith.extui %12 : vector<24x128xi1> to vector<24x128xi32>
    %14 = arith.sitofp %13 : vector<24x128xi32> to vector<24x128xf32>
    %15 = tpu.iota {dimensions = array<i32: 1>} : vector<1x16xi32>
    %c0_10 = arith.constant 0 : index
    %c0_11 = arith.constant 0 : index
    %16 = vector.load %arg5[%c0_10, %c0_11] : memref<24x128xf32, #tpu.memory_space<vmem>>, vector<24x128xf32>
    %c0_12 = arith.constant 0 : index
    %c0_13 = arith.constant 0 : index
    %17 = vector.load %arg6[%c0_12, %c0_13] : memref<24x128xf32, #tpu.memory_space<vmem>>, vector<24x128xf32>
    %cst = arith.constant 0.000000e+00 : f32
    %18 = vector.broadcast %cst : f32 to vector<4x16xf32>
    %c1_i32 = arith.constant 1 : i32
    %19 = tpu.dynamic_rotate %16 by %c1_i32 dim 0 : vector<24x128xf32>, i32 -> vector<24x128xf32>
    %c23_i32 = arith.constant 23 : i32
    %20 = tpu.dynamic_rotate %16 by %c23_i32 dim 0 : vector<24x128xf32>, i32 -> vector<24x128xf32>
    %c1_i32_14 = arith.constant 1 : i32
    %21 = tpu.dynamic_rotate %16 by %c1_i32_14 dim 1 : vector<24x128xf32>, i32 -> vector<24x128xf32>
    %c127_i32 = arith.constant 127 : i32
    %22 = tpu.dynamic_rotate %16 by %c127_i32 dim 1 : vector<24x128xf32>, i32 -> vector<24x128xf32>
    %23 = arith.addf %19, %20 : vector<24x128xf32>
    %24 = arith.addf %21, %22 : vector<24x128xf32>
    %25 = arith.addf %23, %24 : vector<24x128xf32>
    %cst_15 = arith.constant 4.000000e+00 : f32
    %26 = vector.broadcast %cst_15 : f32 to vector<24x128xf32>
    %27 = arith.mulf %26, %16 : vector<24x128xf32>
    %28 = arith.subf %25, %27 : vector<24x128xf32>
    %29 = arith.mulf %4, %16 : vector<24x128xf32>
    %30 = arith.mulf %6, %17 : vector<24x128xf32>
    %31 = arith.subf %29, %30 : vector<24x128xf32>
    %32 = arith.mulf %8, %28 : vector<24x128xf32>
    %33 = arith.addf %31, %32 : vector<24x128xf32>
    %c0_16 = arith.constant 0 : index
    %c0_17 = arith.constant 0 : index
    %34 = vector.load %arg1[%c0_16, %c0_17] : memref<16x128xf32, #tpu.memory_space<vmem>>, vector<1x128xf32>
    %35 = vector.broadcast %34 : vector<1x128xf32> to vector<24x128xf32>
    %36 = arith.mulf %14, %35 : vector<24x128xf32>
    %37 = arith.addf %33, %36 : vector<24x128xf32>
    %38 = vector.shape_cast %37 : vector<24x128xf32> to vector<1x24x128xf32>
    %39 = vector.broadcast %38 : vector<1x24x128xf32> to vector<4x24x128xf32>
    %40 = arith.mulf %39, %9 : vector<4x24x128xf32>
    %cst_18 = arith.constant dense<0.000000e+00> : vector<4x128xf32>
    %41 = vector.multi_reduction <add>, %40, %cst_18 [1] : vector<4x24x128xf32> to vector<4x128xf32>
    %cst_19 = arith.constant dense<0.000000e+00> : vector<4xf32>
    %42 = vector.multi_reduction <add>, %41, %cst_19 [1] : vector<4x128xf32> to vector<4xf32>
    %43 = vector.shape_cast %42 : vector<4xf32> to vector<4x1xf32>
    %c0_i32_20 = arith.constant 0 : i32
    %44 = vector.broadcast %c0_i32_20 : i32 to vector<1x16xi32>
    %45 = arith.cmpi eq, %15, %44 : vector<1x16xi32>
    %46 = arith.extui %45 : vector<1x16xi1> to vector<1x16xi32>
    %47 = arith.sitofp %46 : vector<1x16xi32> to vector<1x16xf32>
    %48 = vector.broadcast %43 : vector<4x1xf32> to vector<4x16xf32>
    %49 = vector.broadcast %47 : vector<1x16xf32> to vector<4x16xf32>
    %50 = arith.mulf %48, %49 : vector<4x16xf32>
    %51 = arith.addf %18, %50 : vector<4x16xf32>
    %c1_i32_21 = arith.constant 1 : i32
    %52 = tpu.dynamic_rotate %37 by %c1_i32_21 dim 0 : vector<24x128xf32>, i32 -> vector<24x128xf32>
    %c23_i32_22 = arith.constant 23 : i32
    %53 = tpu.dynamic_rotate %37 by %c23_i32_22 dim 0 : vector<24x128xf32>, i32 -> vector<24x128xf32>
    %c1_i32_23 = arith.constant 1 : i32
    %54 = tpu.dynamic_rotate %37 by %c1_i32_23 dim 1 : vector<24x128xf32>, i32 -> vector<24x128xf32>
    %c127_i32_24 = arith.constant 127 : i32
    %55 = tpu.dynamic_rotate %37 by %c127_i32_24 dim 1 : vector<24x128xf32>, i32 -> vector<24x128xf32>
    %56 = arith.addf %52, %53 : vector<24x128xf32>
    %57 = arith.addf %54, %55 : vector<24x128xf32>
    %58 = arith.addf %56, %57 : vector<24x128xf32>
    %cst_25 = arith.constant 4.000000e+00 : f32
    %59 = vector.broadcast %cst_25 : f32 to vector<24x128xf32>
    %60 = arith.mulf %59, %37 : vector<24x128xf32>
    %61 = arith.subf %58, %60 : vector<24x128xf32>
    %62 = arith.mulf %4, %37 : vector<24x128xf32>
    %63 = arith.mulf %6, %16 : vector<24x128xf32>
    %64 = arith.subf %62, %63 : vector<24x128xf32>
    %65 = arith.mulf %8, %61 : vector<24x128xf32>
    %66 = arith.addf %64, %65 : vector<24x128xf32>
    %c1_26 = arith.constant 1 : index
    %c0_27 = arith.constant 0 : index
    %67 = vector.load %arg1[%c1_26, %c0_27] : memref<16x128xf32, #tpu.memory_space<vmem>>, vector<1x128xf32>
    %68 = vector.broadcast %67 : vector<1x128xf32> to vector<24x128xf32>
    %69 = arith.mulf %14, %68 : vector<24x128xf32>
    %70 = arith.addf %66, %69 : vector<24x128xf32>
    %71 = vector.shape_cast %70 : vector<24x128xf32> to vector<1x24x128xf32>
    %72 = vector.broadcast %71 : vector<1x24x128xf32> to vector<4x24x128xf32>
    %73 = arith.mulf %72, %9 : vector<4x24x128xf32>
    %cst_28 = arith.constant dense<0.000000e+00> : vector<4x128xf32>
    %74 = vector.multi_reduction <add>, %73, %cst_28 [1] : vector<4x24x128xf32> to vector<4x128xf32>
    %cst_29 = arith.constant dense<0.000000e+00> : vector<4xf32>
    %75 = vector.multi_reduction <add>, %74, %cst_29 [1] : vector<4x128xf32> to vector<4xf32>
    %76 = vector.shape_cast %75 : vector<4xf32> to vector<4x1xf32>
    %c1_i32_30 = arith.constant 1 : i32
    %77 = vector.broadcast %c1_i32_30 : i32 to vector<1x16xi32>
    %78 = arith.cmpi eq, %15, %77 : vector<1x16xi32>
    %79 = arith.extui %78 : vector<1x16xi1> to vector<1x16xi32>
    %80 = arith.sitofp %79 : vector<1x16xi32> to vector<1x16xf32>
    %81 = vector.broadcast %76 : vector<4x1xf32> to vector<4x16xf32>
    %82 = vector.broadcast %80 : vector<1x16xf32> to vector<4x16xf32>
    %83 = arith.mulf %81, %82 : vector<4x16xf32>
    %84 = arith.addf %51, %83 : vector<4x16xf32>
    %c1_i32_31 = arith.constant 1 : i32
    %85 = tpu.dynamic_rotate %70 by %c1_i32_31 dim 0 : vector<24x128xf32>, i32 -> vector<24x128xf32>
    %c23_i32_32 = arith.constant 23 : i32
    %86 = tpu.dynamic_rotate %70 by %c23_i32_32 dim 0 : vector<24x128xf32>, i32 -> vector<24x128xf32>
    %c1_i32_33 = arith.constant 1 : i32
    %87 = tpu.dynamic_rotate %70 by %c1_i32_33 dim 1 : vector<24x128xf32>, i32 -> vector<24x128xf32>
    %c127_i32_34 = arith.constant 127 : i32
    %88 = tpu.dynamic_rotate %70 by %c127_i32_34 dim 1 : vector<24x128xf32>, i32 -> vector<24x128xf32>
    %89 = arith.addf %85, %86 : vector<24x128xf32>
    %90 = arith.addf %87, %88 : vector<24x128xf32>
    %91 = arith.addf %89, %90 : vector<24x128xf32>
    %cst_35 = arith.constant 4.000000e+00 : f32
    %92 = vector.broadcast %cst_35 : f32 to vector<24x128xf32>
    %93 = arith.mulf %92, %70 : vector<24x128xf32>
    %94 = arith.subf %91, %93 : vector<24x128xf32>
    %95 = arith.mulf %4, %70 : vector<24x128xf32>
    %96 = arith.mulf %6, %37 : vector<24x128xf32>
    %97 = arith.subf %95, %96 : vector<24x128xf32>
    %98 = arith.mulf %8, %94 : vector<24x128xf32>
    %99 = arith.addf %97, %98 : vector<24x128xf32>
    %c2_36 = arith.constant 2 : index
    %c0_37 = arith.constant 0 : index
    %100 = vector.load %arg1[%c2_36, %c0_37] : memref<16x128xf32, #tpu.memory_space<vmem>>, vector<1x128xf32>
    %101 = vector.broadcast %100 : vector<1x128xf32> to vector<24x128xf32>
    %102 = arith.mulf %14, %101 : vector<24x128xf32>
    %103 = arith.addf %99, %102 : vector<24x128xf32>
    %104 = vector.shape_cast %103 : vector<24x128xf32> to vector<1x24x128xf32>
    %105 = vector.broadcast %104 : vector<1x24x128xf32> to vector<4x24x128xf32>
    %106 = arith.mulf %105, %9 : vector<4x24x128xf32>
    %cst_38 = arith.constant dense<0.000000e+00> : vector<4x128xf32>
    %107 = vector.multi_reduction <add>, %106, %cst_38 [1] : vector<4x24x128xf32> to vector<4x128xf32>
    %cst_39 = arith.constant dense<0.000000e+00> : vector<4xf32>
    %108 = vector.multi_reduction <add>, %107, %cst_39 [1] : vector<4x128xf32> to vector<4xf32>
    %109 = vector.shape_cast %108 : vector<4xf32> to vector<4x1xf32>
    %c2_i32 = arith.constant 2 : i32
    %110 = vector.broadcast %c2_i32 : i32 to vector<1x16xi32>
    %111 = arith.cmpi eq, %15, %110 : vector<1x16xi32>
    %112 = arith.extui %111 : vector<1x16xi1> to vector<1x16xi32>
    %113 = arith.sitofp %112 : vector<1x16xi32> to vector<1x16xf32>
    %114 = vector.broadcast %109 : vector<4x1xf32> to vector<4x16xf32>
    %115 = vector.broadcast %113 : vector<1x16xf32> to vector<4x16xf32>
    %116 = arith.mulf %114, %115 : vector<4x16xf32>
    %117 = arith.addf %84, %116 : vector<4x16xf32>
    %c1_i32_40 = arith.constant 1 : i32
    %118 = tpu.dynamic_rotate %103 by %c1_i32_40 dim 0 : vector<24x128xf32>, i32 -> vector<24x128xf32>
    %c23_i32_41 = arith.constant 23 : i32
    %119 = tpu.dynamic_rotate %103 by %c23_i32_41 dim 0 : vector<24x128xf32>, i32 -> vector<24x128xf32>
    %c1_i32_42 = arith.constant 1 : i32
    %120 = tpu.dynamic_rotate %103 by %c1_i32_42 dim 1 : vector<24x128xf32>, i32 -> vector<24x128xf32>
    %c127_i32_43 = arith.constant 127 : i32
    %121 = tpu.dynamic_rotate %103 by %c127_i32_43 dim 1 : vector<24x128xf32>, i32 -> vector<24x128xf32>
    %122 = arith.addf %118, %119 : vector<24x128xf32>
    %123 = arith.addf %120, %121 : vector<24x128xf32>
    %124 = arith.addf %122, %123 : vector<24x128xf32>
    %cst_44 = arith.constant 4.000000e+00 : f32
    %125 = vector.broadcast %cst_44 : f32 to vector<24x128xf32>
    %126 = arith.mulf %125, %103 : vector<24x128xf32>
    %127 = arith.subf %124, %126 : vector<24x128xf32>
    %128 = arith.mulf %4, %103 : vector<24x128xf32>
    %129 = arith.mulf %6, %70 : vector<24x128xf32>
    %130 = arith.subf %128, %129 : vector<24x128xf32>
    %131 = arith.mulf %8, %127 : vector<24x128xf32>
    %132 = arith.addf %130, %131 : vector<24x128xf32>
    %c3 = arith.constant 3 : index
    %c0_45 = arith.constant 0 : index
    %133 = vector.load %arg1[%c3, %c0_45] : memref<16x128xf32, #tpu.memory_space<vmem>>, vector<1x128xf32>
    %134 = vector.broadcast %133 : vector<1x128xf32> to vector<24x128xf32>
    %135 = arith.mulf %14, %134 : vector<24x128xf32>
    %136 = arith.addf %132, %135 : vector<24x128xf32>
    %137 = vector.shape_cast %136 : vector<24x128xf32> to vector<1x24x128xf32>
    %138 = vector.broadcast %137 : vector<1x24x128xf32> to vector<4x24x128xf32>
    %139 = arith.mulf %138, %9 : vector<4x24x128xf32>
    %cst_46 = arith.constant dense<0.000000e+00> : vector<4x128xf32>
    %140 = vector.multi_reduction <add>, %139, %cst_46 [1] : vector<4x24x128xf32> to vector<4x128xf32>
    %cst_47 = arith.constant dense<0.000000e+00> : vector<4xf32>
    %141 = vector.multi_reduction <add>, %140, %cst_47 [1] : vector<4x128xf32> to vector<4xf32>
    %142 = vector.shape_cast %141 : vector<4xf32> to vector<4x1xf32>
    %c3_i32 = arith.constant 3 : i32
    %143 = vector.broadcast %c3_i32 : i32 to vector<1x16xi32>
    %144 = arith.cmpi eq, %15, %143 : vector<1x16xi32>
    %145 = arith.extui %144 : vector<1x16xi1> to vector<1x16xi32>
    %146 = arith.sitofp %145 : vector<1x16xi32> to vector<1x16xf32>
    %147 = vector.broadcast %142 : vector<4x1xf32> to vector<4x16xf32>
    %148 = vector.broadcast %146 : vector<1x16xf32> to vector<4x16xf32>
    %149 = arith.mulf %147, %148 : vector<4x16xf32>
    %150 = arith.addf %117, %149 : vector<4x16xf32>
    %c1_i32_48 = arith.constant 1 : i32
    %151 = tpu.dynamic_rotate %136 by %c1_i32_48 dim 0 : vector<24x128xf32>, i32 -> vector<24x128xf32>
    %c23_i32_49 = arith.constant 23 : i32
    %152 = tpu.dynamic_rotate %136 by %c23_i32_49 dim 0 : vector<24x128xf32>, i32 -> vector<24x128xf32>
    %c1_i32_50 = arith.constant 1 : i32
    %153 = tpu.dynamic_rotate %136 by %c1_i32_50 dim 1 : vector<24x128xf32>, i32 -> vector<24x128xf32>
    %c127_i32_51 = arith.constant 127 : i32
    %154 = tpu.dynamic_rotate %136 by %c127_i32_51 dim 1 : vector<24x128xf32>, i32 -> vector<24x128xf32>
    %155 = arith.addf %151, %152 : vector<24x128xf32>
    %156 = arith.addf %153, %154 : vector<24x128xf32>
    %157 = arith.addf %155, %156 : vector<24x128xf32>
    %cst_52 = arith.constant 4.000000e+00 : f32
    %158 = vector.broadcast %cst_52 : f32 to vector<24x128xf32>
    %159 = arith.mulf %158, %136 : vector<24x128xf32>
    %160 = arith.subf %157, %159 : vector<24x128xf32>
    %161 = arith.mulf %4, %136 : vector<24x128xf32>
    %162 = arith.mulf %6, %103 : vector<24x128xf32>
    %163 = arith.subf %161, %162 : vector<24x128xf32>
    %164 = arith.mulf %8, %160 : vector<24x128xf32>
    %165 = arith.addf %163, %164 : vector<24x128xf32>
    %c4 = arith.constant 4 : index
    %c0_53 = arith.constant 0 : index
    %166 = vector.load %arg1[%c4, %c0_53] : memref<16x128xf32, #tpu.memory_space<vmem>>, vector<1x128xf32>
    %167 = vector.broadcast %166 : vector<1x128xf32> to vector<24x128xf32>
    %168 = arith.mulf %14, %167 : vector<24x128xf32>
    %169 = arith.addf %165, %168 : vector<24x128xf32>
    %170 = vector.shape_cast %169 : vector<24x128xf32> to vector<1x24x128xf32>
    %171 = vector.broadcast %170 : vector<1x24x128xf32> to vector<4x24x128xf32>
    %172 = arith.mulf %171, %9 : vector<4x24x128xf32>
    %cst_54 = arith.constant dense<0.000000e+00> : vector<4x128xf32>
    %173 = vector.multi_reduction <add>, %172, %cst_54 [1] : vector<4x24x128xf32> to vector<4x128xf32>
    %cst_55 = arith.constant dense<0.000000e+00> : vector<4xf32>
    %174 = vector.multi_reduction <add>, %173, %cst_55 [1] : vector<4x128xf32> to vector<4xf32>
    %175 = vector.shape_cast %174 : vector<4xf32> to vector<4x1xf32>
    %c4_i32 = arith.constant 4 : i32
    %176 = vector.broadcast %c4_i32 : i32 to vector<1x16xi32>
    %177 = arith.cmpi eq, %15, %176 : vector<1x16xi32>
    %178 = arith.extui %177 : vector<1x16xi1> to vector<1x16xi32>
    %179 = arith.sitofp %178 : vector<1x16xi32> to vector<1x16xf32>
    %180 = vector.broadcast %175 : vector<4x1xf32> to vector<4x16xf32>
    %181 = vector.broadcast %179 : vector<1x16xf32> to vector<4x16xf32>
    %182 = arith.mulf %180, %181 : vector<4x16xf32>
    %183 = arith.addf %150, %182 : vector<4x16xf32>
    %c1_i32_56 = arith.constant 1 : i32
    %184 = tpu.dynamic_rotate %169 by %c1_i32_56 dim 0 : vector<24x128xf32>, i32 -> vector<24x128xf32>
    %c23_i32_57 = arith.constant 23 : i32
    %185 = tpu.dynamic_rotate %169 by %c23_i32_57 dim 0 : vector<24x128xf32>, i32 -> vector<24x128xf32>
    %c1_i32_58 = arith.constant 1 : i32
    %186 = tpu.dynamic_rotate %169 by %c1_i32_58 dim 1 : vector<24x128xf32>, i32 -> vector<24x128xf32>
    %c127_i32_59 = arith.constant 127 : i32
    %187 = tpu.dynamic_rotate %169 by %c127_i32_59 dim 1 : vector<24x128xf32>, i32 -> vector<24x128xf32>
    %188 = arith.addf %184, %185 : vector<24x128xf32>
    %189 = arith.addf %186, %187 : vector<24x128xf32>
    %190 = arith.addf %188, %189 : vector<24x128xf32>
    %cst_60 = arith.constant 4.000000e+00 : f32
    %191 = vector.broadcast %cst_60 : f32 to vector<24x128xf32>
    %192 = arith.mulf %191, %169 : vector<24x128xf32>
    %193 = arith.subf %190, %192 : vector<24x128xf32>
    %194 = arith.mulf %4, %169 : vector<24x128xf32>
    %195 = arith.mulf %6, %136 : vector<24x128xf32>
    %196 = arith.subf %194, %195 : vector<24x128xf32>
    %197 = arith.mulf %8, %193 : vector<24x128xf32>
    %198 = arith.addf %196, %197 : vector<24x128xf32>
    %c5 = arith.constant 5 : index
    %c0_61 = arith.constant 0 : index
    %199 = vector.load %arg1[%c5, %c0_61] : memref<16x128xf32, #tpu.memory_space<vmem>>, vector<1x128xf32>
    %200 = vector.broadcast %199 : vector<1x128xf32> to vector<24x128xf32>
    %201 = arith.mulf %14, %200 : vector<24x128xf32>
    %202 = arith.addf %198, %201 : vector<24x128xf32>
    %203 = vector.shape_cast %202 : vector<24x128xf32> to vector<1x24x128xf32>
    %204 = vector.broadcast %203 : vector<1x24x128xf32> to vector<4x24x128xf32>
    %205 = arith.mulf %204, %9 : vector<4x24x128xf32>
    %cst_62 = arith.constant dense<0.000000e+00> : vector<4x128xf32>
    %206 = vector.multi_reduction <add>, %205, %cst_62 [1] : vector<4x24x128xf32> to vector<4x128xf32>
    %cst_63 = arith.constant dense<0.000000e+00> : vector<4xf32>
    %207 = vector.multi_reduction <add>, %206, %cst_63 [1] : vector<4x128xf32> to vector<4xf32>
    %208 = vector.shape_cast %207 : vector<4xf32> to vector<4x1xf32>
    %c5_i32 = arith.constant 5 : i32
    %209 = vector.broadcast %c5_i32 : i32 to vector<1x16xi32>
    %210 = arith.cmpi eq, %15, %209 : vector<1x16xi32>
    %211 = arith.extui %210 : vector<1x16xi1> to vector<1x16xi32>
    %212 = arith.sitofp %211 : vector<1x16xi32> to vector<1x16xf32>
    %213 = vector.broadcast %208 : vector<4x1xf32> to vector<4x16xf32>
    %214 = vector.broadcast %212 : vector<1x16xf32> to vector<4x16xf32>
    %215 = arith.mulf %213, %214 : vector<4x16xf32>
    %216 = arith.addf %183, %215 : vector<4x16xf32>
    %c1_i32_64 = arith.constant 1 : i32
    %217 = tpu.dynamic_rotate %202 by %c1_i32_64 dim 0 : vector<24x128xf32>, i32 -> vector<24x128xf32>
    %c23_i32_65 = arith.constant 23 : i32
    %218 = tpu.dynamic_rotate %202 by %c23_i32_65 dim 0 : vector<24x128xf32>, i32 -> vector<24x128xf32>
    %c1_i32_66 = arith.constant 1 : i32
    %219 = tpu.dynamic_rotate %202 by %c1_i32_66 dim 1 : vector<24x128xf32>, i32 -> vector<24x128xf32>
    %c127_i32_67 = arith.constant 127 : i32
    %220 = tpu.dynamic_rotate %202 by %c127_i32_67 dim 1 : vector<24x128xf32>, i32 -> vector<24x128xf32>
    %221 = arith.addf %217, %218 : vector<24x128xf32>
    %222 = arith.addf %219, %220 : vector<24x128xf32>
    %223 = arith.addf %221, %222 : vector<24x128xf32>
    %cst_68 = arith.constant 4.000000e+00 : f32
    %224 = vector.broadcast %cst_68 : f32 to vector<24x128xf32>
    %225 = arith.mulf %224, %202 : vector<24x128xf32>
    %226 = arith.subf %223, %225 : vector<24x128xf32>
    %227 = arith.mulf %4, %202 : vector<24x128xf32>
    %228 = arith.mulf %6, %169 : vector<24x128xf32>
    %229 = arith.subf %227, %228 : vector<24x128xf32>
    %230 = arith.mulf %8, %226 : vector<24x128xf32>
    %231 = arith.addf %229, %230 : vector<24x128xf32>
    %c6 = arith.constant 6 : index
    %c0_69 = arith.constant 0 : index
    %232 = vector.load %arg1[%c6, %c0_69] : memref<16x128xf32, #tpu.memory_space<vmem>>, vector<1x128xf32>
    %233 = vector.broadcast %232 : vector<1x128xf32> to vector<24x128xf32>
    %234 = arith.mulf %14, %233 : vector<24x128xf32>
    %235 = arith.addf %231, %234 : vector<24x128xf32>
    %236 = vector.shape_cast %235 : vector<24x128xf32> to vector<1x24x128xf32>
    %237 = vector.broadcast %236 : vector<1x24x128xf32> to vector<4x24x128xf32>
    %238 = arith.mulf %237, %9 : vector<4x24x128xf32>
    %cst_70 = arith.constant dense<0.000000e+00> : vector<4x128xf32>
    %239 = vector.multi_reduction <add>, %238, %cst_70 [1] : vector<4x24x128xf32> to vector<4x128xf32>
    %cst_71 = arith.constant dense<0.000000e+00> : vector<4xf32>
    %240 = vector.multi_reduction <add>, %239, %cst_71 [1] : vector<4x128xf32> to vector<4xf32>
    %241 = vector.shape_cast %240 : vector<4xf32> to vector<4x1xf32>
    %c6_i32 = arith.constant 6 : i32
    %242 = vector.broadcast %c6_i32 : i32 to vector<1x16xi32>
    %243 = arith.cmpi eq, %15, %242 : vector<1x16xi32>
    %244 = arith.extui %243 : vector<1x16xi1> to vector<1x16xi32>
    %245 = arith.sitofp %244 : vector<1x16xi32> to vector<1x16xf32>
    %246 = vector.broadcast %241 : vector<4x1xf32> to vector<4x16xf32>
    %247 = vector.broadcast %245 : vector<1x16xf32> to vector<4x16xf32>
    %248 = arith.mulf %246, %247 : vector<4x16xf32>
    %249 = arith.addf %216, %248 : vector<4x16xf32>
    %c1_i32_72 = arith.constant 1 : i32
    %250 = tpu.dynamic_rotate %235 by %c1_i32_72 dim 0 : vector<24x128xf32>, i32 -> vector<24x128xf32>
    %c23_i32_73 = arith.constant 23 : i32
    %251 = tpu.dynamic_rotate %235 by %c23_i32_73 dim 0 : vector<24x128xf32>, i32 -> vector<24x128xf32>
    %c1_i32_74 = arith.constant 1 : i32
    %252 = tpu.dynamic_rotate %235 by %c1_i32_74 dim 1 : vector<24x128xf32>, i32 -> vector<24x128xf32>
    %c127_i32_75 = arith.constant 127 : i32
    %253 = tpu.dynamic_rotate %235 by %c127_i32_75 dim 1 : vector<24x128xf32>, i32 -> vector<24x128xf32>
    %254 = arith.addf %250, %251 : vector<24x128xf32>
    %255 = arith.addf %252, %253 : vector<24x128xf32>
    %256 = arith.addf %254, %255 : vector<24x128xf32>
    %cst_76 = arith.constant 4.000000e+00 : f32
    %257 = vector.broadcast %cst_76 : f32 to vector<24x128xf32>
    %258 = arith.mulf %257, %235 : vector<24x128xf32>
    %259 = arith.subf %256, %258 : vector<24x128xf32>
    %260 = arith.mulf %4, %235 : vector<24x128xf32>
    %261 = arith.mulf %6, %202 : vector<24x128xf32>
    %262 = arith.subf %260, %261 : vector<24x128xf32>
    %263 = arith.mulf %8, %259 : vector<24x128xf32>
    %264 = arith.addf %262, %263 : vector<24x128xf32>
    %c7 = arith.constant 7 : index
    %c0_77 = arith.constant 0 : index
    %265 = vector.load %arg1[%c7, %c0_77] : memref<16x128xf32, #tpu.memory_space<vmem>>, vector<1x128xf32>
    %266 = vector.broadcast %265 : vector<1x128xf32> to vector<24x128xf32>
    %267 = arith.mulf %14, %266 : vector<24x128xf32>
    %268 = arith.addf %264, %267 : vector<24x128xf32>
    %269 = vector.shape_cast %268 : vector<24x128xf32> to vector<1x24x128xf32>
    %270 = vector.broadcast %269 : vector<1x24x128xf32> to vector<4x24x128xf32>
    %271 = arith.mulf %270, %9 : vector<4x24x128xf32>
    %cst_78 = arith.constant dense<0.000000e+00> : vector<4x128xf32>
    %272 = vector.multi_reduction <add>, %271, %cst_78 [1] : vector<4x24x128xf32> to vector<4x128xf32>
    %cst_79 = arith.constant dense<0.000000e+00> : vector<4xf32>
    %273 = vector.multi_reduction <add>, %272, %cst_79 [1] : vector<4x128xf32> to vector<4xf32>
    %274 = vector.shape_cast %273 : vector<4xf32> to vector<4x1xf32>
    %c7_i32 = arith.constant 7 : i32
    %275 = vector.broadcast %c7_i32 : i32 to vector<1x16xi32>
    %276 = arith.cmpi eq, %15, %275 : vector<1x16xi32>
    %277 = arith.extui %276 : vector<1x16xi1> to vector<1x16xi32>
    %278 = arith.sitofp %277 : vector<1x16xi32> to vector<1x16xf32>
    %279 = vector.broadcast %274 : vector<4x1xf32> to vector<4x16xf32>
    %280 = vector.broadcast %278 : vector<1x16xf32> to vector<4x16xf32>
    %281 = arith.mulf %279, %280 : vector<4x16xf32>
    %282 = arith.addf %249, %281 : vector<4x16xf32>
    %c1_i32_80 = arith.constant 1 : i32
    %283 = tpu.dynamic_rotate %268 by %c1_i32_80 dim 0 : vector<24x128xf32>, i32 -> vector<24x128xf32>
    %c23_i32_81 = arith.constant 23 : i32
    %284 = tpu.dynamic_rotate %268 by %c23_i32_81 dim 0 : vector<24x128xf32>, i32 -> vector<24x128xf32>
    %c1_i32_82 = arith.constant 1 : i32
    %285 = tpu.dynamic_rotate %268 by %c1_i32_82 dim 1 : vector<24x128xf32>, i32 -> vector<24x128xf32>
    %c127_i32_83 = arith.constant 127 : i32
    %286 = tpu.dynamic_rotate %268 by %c127_i32_83 dim 1 : vector<24x128xf32>, i32 -> vector<24x128xf32>
    %287 = arith.addf %283, %284 : vector<24x128xf32>
    %288 = arith.addf %285, %286 : vector<24x128xf32>
    %289 = arith.addf %287, %288 : vector<24x128xf32>
    %cst_84 = arith.constant 4.000000e+00 : f32
    %290 = vector.broadcast %cst_84 : f32 to vector<24x128xf32>
    %291 = arith.mulf %290, %268 : vector<24x128xf32>
    %292 = arith.subf %289, %291 : vector<24x128xf32>
    %293 = arith.mulf %4, %268 : vector<24x128xf32>
    %294 = arith.mulf %6, %235 : vector<24x128xf32>
    %295 = arith.subf %293, %294 : vector<24x128xf32>
    %296 = arith.mulf %8, %292 : vector<24x128xf32>
    %297 = arith.addf %295, %296 : vector<24x128xf32>
    %c8 = arith.constant 8 : index
    %c0_85 = arith.constant 0 : index
    %298 = vector.load %arg1[%c8, %c0_85] : memref<16x128xf32, #tpu.memory_space<vmem>>, vector<1x128xf32>
    %299 = vector.broadcast %298 : vector<1x128xf32> to vector<24x128xf32>
    %300 = arith.mulf %14, %299 : vector<24x128xf32>
    %301 = arith.addf %297, %300 : vector<24x128xf32>
    %302 = vector.shape_cast %301 : vector<24x128xf32> to vector<1x24x128xf32>
    %303 = vector.broadcast %302 : vector<1x24x128xf32> to vector<4x24x128xf32>
    %304 = arith.mulf %303, %9 : vector<4x24x128xf32>
    %cst_86 = arith.constant dense<0.000000e+00> : vector<4x128xf32>
    %305 = vector.multi_reduction <add>, %304, %cst_86 [1] : vector<4x24x128xf32> to vector<4x128xf32>
    %cst_87 = arith.constant dense<0.000000e+00> : vector<4xf32>
    %306 = vector.multi_reduction <add>, %305, %cst_87 [1] : vector<4x128xf32> to vector<4xf32>
    %307 = vector.shape_cast %306 : vector<4xf32> to vector<4x1xf32>
    %c8_i32 = arith.constant 8 : i32
    %308 = vector.broadcast %c8_i32 : i32 to vector<1x16xi32>
    %309 = arith.cmpi eq, %15, %308 : vector<1x16xi32>
    %310 = arith.extui %309 : vector<1x16xi1> to vector<1x16xi32>
    %311 = arith.sitofp %310 : vector<1x16xi32> to vector<1x16xf32>
    %312 = vector.broadcast %307 : vector<4x1xf32> to vector<4x16xf32>
    %313 = vector.broadcast %311 : vector<1x16xf32> to vector<4x16xf32>
    %314 = arith.mulf %312, %313 : vector<4x16xf32>
    %315 = arith.addf %282, %314 : vector<4x16xf32>
    %c1_i32_88 = arith.constant 1 : i32
    %316 = tpu.dynamic_rotate %301 by %c1_i32_88 dim 0 : vector<24x128xf32>, i32 -> vector<24x128xf32>
    %c23_i32_89 = arith.constant 23 : i32
    %317 = tpu.dynamic_rotate %301 by %c23_i32_89 dim 0 : vector<24x128xf32>, i32 -> vector<24x128xf32>
    %c1_i32_90 = arith.constant 1 : i32
    %318 = tpu.dynamic_rotate %301 by %c1_i32_90 dim 1 : vector<24x128xf32>, i32 -> vector<24x128xf32>
    %c127_i32_91 = arith.constant 127 : i32
    %319 = tpu.dynamic_rotate %301 by %c127_i32_91 dim 1 : vector<24x128xf32>, i32 -> vector<24x128xf32>
    %320 = arith.addf %316, %317 : vector<24x128xf32>
    %321 = arith.addf %318, %319 : vector<24x128xf32>
    %322 = arith.addf %320, %321 : vector<24x128xf32>
    %cst_92 = arith.constant 4.000000e+00 : f32
    %323 = vector.broadcast %cst_92 : f32 to vector<24x128xf32>
    %324 = arith.mulf %323, %301 : vector<24x128xf32>
    %325 = arith.subf %322, %324 : vector<24x128xf32>
    %326 = arith.mulf %4, %301 : vector<24x128xf32>
    %327 = arith.mulf %6, %268 : vector<24x128xf32>
    %328 = arith.subf %326, %327 : vector<24x128xf32>
    %329 = arith.mulf %8, %325 : vector<24x128xf32>
    %330 = arith.addf %328, %329 : vector<24x128xf32>
    %c9 = arith.constant 9 : index
    %c0_93 = arith.constant 0 : index
    %331 = vector.load %arg1[%c9, %c0_93] : memref<16x128xf32, #tpu.memory_space<vmem>>, vector<1x128xf32>
    %332 = vector.broadcast %331 : vector<1x128xf32> to vector<24x128xf32>
    %333 = arith.mulf %14, %332 : vector<24x128xf32>
    %334 = arith.addf %330, %333 : vector<24x128xf32>
    %335 = vector.shape_cast %334 : vector<24x128xf32> to vector<1x24x128xf32>
    %336 = vector.broadcast %335 : vector<1x24x128xf32> to vector<4x24x128xf32>
    %337 = arith.mulf %336, %9 : vector<4x24x128xf32>
    %cst_94 = arith.constant dense<0.000000e+00> : vector<4x128xf32>
    %338 = vector.multi_reduction <add>, %337, %cst_94 [1] : vector<4x24x128xf32> to vector<4x128xf32>
    %cst_95 = arith.constant dense<0.000000e+00> : vector<4xf32>
    %339 = vector.multi_reduction <add>, %338, %cst_95 [1] : vector<4x128xf32> to vector<4xf32>
    %340 = vector.shape_cast %339 : vector<4xf32> to vector<4x1xf32>
    %c9_i32_96 = arith.constant 9 : i32
    %341 = vector.broadcast %c9_i32_96 : i32 to vector<1x16xi32>
    %342 = arith.cmpi eq, %15, %341 : vector<1x16xi32>
    %343 = arith.extui %342 : vector<1x16xi1> to vector<1x16xi32>
    %344 = arith.sitofp %343 : vector<1x16xi32> to vector<1x16xf32>
    %345 = vector.broadcast %340 : vector<4x1xf32> to vector<4x16xf32>
    %346 = vector.broadcast %344 : vector<1x16xf32> to vector<4x16xf32>
    %347 = arith.mulf %345, %346 : vector<4x16xf32>
    %348 = arith.addf %315, %347 : vector<4x16xf32>
    %c1_i32_97 = arith.constant 1 : i32
    %349 = tpu.dynamic_rotate %334 by %c1_i32_97 dim 0 : vector<24x128xf32>, i32 -> vector<24x128xf32>
    %c23_i32_98 = arith.constant 23 : i32
    %350 = tpu.dynamic_rotate %334 by %c23_i32_98 dim 0 : vector<24x128xf32>, i32 -> vector<24x128xf32>
    %c1_i32_99 = arith.constant 1 : i32
    %351 = tpu.dynamic_rotate %334 by %c1_i32_99 dim 1 : vector<24x128xf32>, i32 -> vector<24x128xf32>
    %c127_i32_100 = arith.constant 127 : i32
    %352 = tpu.dynamic_rotate %334 by %c127_i32_100 dim 1 : vector<24x128xf32>, i32 -> vector<24x128xf32>
    %353 = arith.addf %349, %350 : vector<24x128xf32>
    %354 = arith.addf %351, %352 : vector<24x128xf32>
    %355 = arith.addf %353, %354 : vector<24x128xf32>
    %cst_101 = arith.constant 4.000000e+00 : f32
    %356 = vector.broadcast %cst_101 : f32 to vector<24x128xf32>
    %357 = arith.mulf %356, %334 : vector<24x128xf32>
    %358 = arith.subf %355, %357 : vector<24x128xf32>
    %359 = arith.mulf %4, %334 : vector<24x128xf32>
    %360 = arith.mulf %6, %301 : vector<24x128xf32>
    %361 = arith.subf %359, %360 : vector<24x128xf32>
    %362 = arith.mulf %8, %358 : vector<24x128xf32>
    %363 = arith.addf %361, %362 : vector<24x128xf32>
    %c10 = arith.constant 10 : index
    %c0_102 = arith.constant 0 : index
    %364 = vector.load %arg1[%c10, %c0_102] : memref<16x128xf32, #tpu.memory_space<vmem>>, vector<1x128xf32>
    %365 = vector.broadcast %364 : vector<1x128xf32> to vector<24x128xf32>
    %366 = arith.mulf %14, %365 : vector<24x128xf32>
    %367 = arith.addf %363, %366 : vector<24x128xf32>
    %368 = vector.shape_cast %367 : vector<24x128xf32> to vector<1x24x128xf32>
    %369 = vector.broadcast %368 : vector<1x24x128xf32> to vector<4x24x128xf32>
    %370 = arith.mulf %369, %9 : vector<4x24x128xf32>
    %cst_103 = arith.constant dense<0.000000e+00> : vector<4x128xf32>
    %371 = vector.multi_reduction <add>, %370, %cst_103 [1] : vector<4x24x128xf32> to vector<4x128xf32>
    %cst_104 = arith.constant dense<0.000000e+00> : vector<4xf32>
    %372 = vector.multi_reduction <add>, %371, %cst_104 [1] : vector<4x128xf32> to vector<4xf32>
    %373 = vector.shape_cast %372 : vector<4xf32> to vector<4x1xf32>
    %c10_i32 = arith.constant 10 : i32
    %374 = vector.broadcast %c10_i32 : i32 to vector<1x16xi32>
    %375 = arith.cmpi eq, %15, %374 : vector<1x16xi32>
    %376 = arith.extui %375 : vector<1x16xi1> to vector<1x16xi32>
    %377 = arith.sitofp %376 : vector<1x16xi32> to vector<1x16xf32>
    %378 = vector.broadcast %373 : vector<4x1xf32> to vector<4x16xf32>
    %379 = vector.broadcast %377 : vector<1x16xf32> to vector<4x16xf32>
    %380 = arith.mulf %378, %379 : vector<4x16xf32>
    %381 = arith.addf %348, %380 : vector<4x16xf32>
    %c1_i32_105 = arith.constant 1 : i32
    %382 = tpu.dynamic_rotate %367 by %c1_i32_105 dim 0 : vector<24x128xf32>, i32 -> vector<24x128xf32>
    %c23_i32_106 = arith.constant 23 : i32
    %383 = tpu.dynamic_rotate %367 by %c23_i32_106 dim 0 : vector<24x128xf32>, i32 -> vector<24x128xf32>
    %c1_i32_107 = arith.constant 1 : i32
    %384 = tpu.dynamic_rotate %367 by %c1_i32_107 dim 1 : vector<24x128xf32>, i32 -> vector<24x128xf32>
    %c127_i32_108 = arith.constant 127 : i32
    %385 = tpu.dynamic_rotate %367 by %c127_i32_108 dim 1 : vector<24x128xf32>, i32 -> vector<24x128xf32>
    %386 = arith.addf %382, %383 : vector<24x128xf32>
    %387 = arith.addf %384, %385 : vector<24x128xf32>
    %388 = arith.addf %386, %387 : vector<24x128xf32>
    %cst_109 = arith.constant 4.000000e+00 : f32
    %389 = vector.broadcast %cst_109 : f32 to vector<24x128xf32>
    %390 = arith.mulf %389, %367 : vector<24x128xf32>
    %391 = arith.subf %388, %390 : vector<24x128xf32>
    %392 = arith.mulf %4, %367 : vector<24x128xf32>
    %393 = arith.mulf %6, %334 : vector<24x128xf32>
    %394 = arith.subf %392, %393 : vector<24x128xf32>
    %395 = arith.mulf %8, %391 : vector<24x128xf32>
    %396 = arith.addf %394, %395 : vector<24x128xf32>
    %c11 = arith.constant 11 : index
    %c0_110 = arith.constant 0 : index
    %397 = vector.load %arg1[%c11, %c0_110] : memref<16x128xf32, #tpu.memory_space<vmem>>, vector<1x128xf32>
    %398 = vector.broadcast %397 : vector<1x128xf32> to vector<24x128xf32>
    %399 = arith.mulf %14, %398 : vector<24x128xf32>
    %400 = arith.addf %396, %399 : vector<24x128xf32>
    %401 = vector.shape_cast %400 : vector<24x128xf32> to vector<1x24x128xf32>
    %402 = vector.broadcast %401 : vector<1x24x128xf32> to vector<4x24x128xf32>
    %403 = arith.mulf %402, %9 : vector<4x24x128xf32>
    %cst_111 = arith.constant dense<0.000000e+00> : vector<4x128xf32>
    %404 = vector.multi_reduction <add>, %403, %cst_111 [1] : vector<4x24x128xf32> to vector<4x128xf32>
    %cst_112 = arith.constant dense<0.000000e+00> : vector<4xf32>
    %405 = vector.multi_reduction <add>, %404, %cst_112 [1] : vector<4x128xf32> to vector<4xf32>
    %406 = vector.shape_cast %405 : vector<4xf32> to vector<4x1xf32>
    %c11_i32 = arith.constant 11 : i32
    %407 = vector.broadcast %c11_i32 : i32 to vector<1x16xi32>
    %408 = arith.cmpi eq, %15, %407 : vector<1x16xi32>
    %409 = arith.extui %408 : vector<1x16xi1> to vector<1x16xi32>
    %410 = arith.sitofp %409 : vector<1x16xi32> to vector<1x16xf32>
    %411 = vector.broadcast %406 : vector<4x1xf32> to vector<4x16xf32>
    %412 = vector.broadcast %410 : vector<1x16xf32> to vector<4x16xf32>
    %413 = arith.mulf %411, %412 : vector<4x16xf32>
    %414 = arith.addf %381, %413 : vector<4x16xf32>
    %c1_i32_113 = arith.constant 1 : i32
    %415 = tpu.dynamic_rotate %400 by %c1_i32_113 dim 0 : vector<24x128xf32>, i32 -> vector<24x128xf32>
    %c23_i32_114 = arith.constant 23 : i32
    %416 = tpu.dynamic_rotate %400 by %c23_i32_114 dim 0 : vector<24x128xf32>, i32 -> vector<24x128xf32>
    %c1_i32_115 = arith.constant 1 : i32
    %417 = tpu.dynamic_rotate %400 by %c1_i32_115 dim 1 : vector<24x128xf32>, i32 -> vector<24x128xf32>
    %c127_i32_116 = arith.constant 127 : i32
    %418 = tpu.dynamic_rotate %400 by %c127_i32_116 dim 1 : vector<24x128xf32>, i32 -> vector<24x128xf32>
    %419 = arith.addf %415, %416 : vector<24x128xf32>
    %420 = arith.addf %417, %418 : vector<24x128xf32>
    %421 = arith.addf %419, %420 : vector<24x128xf32>
    %cst_117 = arith.constant 4.000000e+00 : f32
    %422 = vector.broadcast %cst_117 : f32 to vector<24x128xf32>
    %423 = arith.mulf %422, %400 : vector<24x128xf32>
    %424 = arith.subf %421, %423 : vector<24x128xf32>
    %425 = arith.mulf %4, %400 : vector<24x128xf32>
    %426 = arith.mulf %6, %367 : vector<24x128xf32>
    %427 = arith.subf %425, %426 : vector<24x128xf32>
    %428 = arith.mulf %8, %424 : vector<24x128xf32>
    %429 = arith.addf %427, %428 : vector<24x128xf32>
    %c12 = arith.constant 12 : index
    %c0_118 = arith.constant 0 : index
    %430 = vector.load %arg1[%c12, %c0_118] : memref<16x128xf32, #tpu.memory_space<vmem>>, vector<1x128xf32>
    %431 = vector.broadcast %430 : vector<1x128xf32> to vector<24x128xf32>
    %432 = arith.mulf %14, %431 : vector<24x128xf32>
    %433 = arith.addf %429, %432 : vector<24x128xf32>
    %434 = vector.shape_cast %433 : vector<24x128xf32> to vector<1x24x128xf32>
    %435 = vector.broadcast %434 : vector<1x24x128xf32> to vector<4x24x128xf32>
    %436 = arith.mulf %435, %9 : vector<4x24x128xf32>
    %cst_119 = arith.constant dense<0.000000e+00> : vector<4x128xf32>
    %437 = vector.multi_reduction <add>, %436, %cst_119 [1] : vector<4x24x128xf32> to vector<4x128xf32>
    %cst_120 = arith.constant dense<0.000000e+00> : vector<4xf32>
    %438 = vector.multi_reduction <add>, %437, %cst_120 [1] : vector<4x128xf32> to vector<4xf32>
    %439 = vector.shape_cast %438 : vector<4xf32> to vector<4x1xf32>
    %c12_i32 = arith.constant 12 : i32
    %440 = vector.broadcast %c12_i32 : i32 to vector<1x16xi32>
    %441 = arith.cmpi eq, %15, %440 : vector<1x16xi32>
    %442 = arith.extui %441 : vector<1x16xi1> to vector<1x16xi32>
    %443 = arith.sitofp %442 : vector<1x16xi32> to vector<1x16xf32>
    %444 = vector.broadcast %439 : vector<4x1xf32> to vector<4x16xf32>
    %445 = vector.broadcast %443 : vector<1x16xf32> to vector<4x16xf32>
    %446 = arith.mulf %444, %445 : vector<4x16xf32>
    %447 = arith.addf %414, %446 : vector<4x16xf32>
    %c1_i32_121 = arith.constant 1 : i32
    %448 = tpu.dynamic_rotate %433 by %c1_i32_121 dim 0 : vector<24x128xf32>, i32 -> vector<24x128xf32>
    %c23_i32_122 = arith.constant 23 : i32
    %449 = tpu.dynamic_rotate %433 by %c23_i32_122 dim 0 : vector<24x128xf32>, i32 -> vector<24x128xf32>
    %c1_i32_123 = arith.constant 1 : i32
    %450 = tpu.dynamic_rotate %433 by %c1_i32_123 dim 1 : vector<24x128xf32>, i32 -> vector<24x128xf32>
    %c127_i32_124 = arith.constant 127 : i32
    %451 = tpu.dynamic_rotate %433 by %c127_i32_124 dim 1 : vector<24x128xf32>, i32 -> vector<24x128xf32>
    %452 = arith.addf %448, %449 : vector<24x128xf32>
    %453 = arith.addf %450, %451 : vector<24x128xf32>
    %454 = arith.addf %452, %453 : vector<24x128xf32>
    %cst_125 = arith.constant 4.000000e+00 : f32
    %455 = vector.broadcast %cst_125 : f32 to vector<24x128xf32>
    %456 = arith.mulf %455, %433 : vector<24x128xf32>
    %457 = arith.subf %454, %456 : vector<24x128xf32>
    %458 = arith.mulf %4, %433 : vector<24x128xf32>
    %459 = arith.mulf %6, %400 : vector<24x128xf32>
    %460 = arith.subf %458, %459 : vector<24x128xf32>
    %461 = arith.mulf %8, %457 : vector<24x128xf32>
    %462 = arith.addf %460, %461 : vector<24x128xf32>
    %c13 = arith.constant 13 : index
    %c0_126 = arith.constant 0 : index
    %463 = vector.load %arg1[%c13, %c0_126] : memref<16x128xf32, #tpu.memory_space<vmem>>, vector<1x128xf32>
    %464 = vector.broadcast %463 : vector<1x128xf32> to vector<24x128xf32>
    %465 = arith.mulf %14, %464 : vector<24x128xf32>
    %466 = arith.addf %462, %465 : vector<24x128xf32>
    %467 = vector.shape_cast %466 : vector<24x128xf32> to vector<1x24x128xf32>
    %468 = vector.broadcast %467 : vector<1x24x128xf32> to vector<4x24x128xf32>
    %469 = arith.mulf %468, %9 : vector<4x24x128xf32>
    %cst_127 = arith.constant dense<0.000000e+00> : vector<4x128xf32>
    %470 = vector.multi_reduction <add>, %469, %cst_127 [1] : vector<4x24x128xf32> to vector<4x128xf32>
    %cst_128 = arith.constant dense<0.000000e+00> : vector<4xf32>
    %471 = vector.multi_reduction <add>, %470, %cst_128 [1] : vector<4x128xf32> to vector<4xf32>
    %472 = vector.shape_cast %471 : vector<4xf32> to vector<4x1xf32>
    %c13_i32 = arith.constant 13 : i32
    %473 = vector.broadcast %c13_i32 : i32 to vector<1x16xi32>
    %474 = arith.cmpi eq, %15, %473 : vector<1x16xi32>
    %475 = arith.extui %474 : vector<1x16xi1> to vector<1x16xi32>
    %476 = arith.sitofp %475 : vector<1x16xi32> to vector<1x16xf32>
    %477 = vector.broadcast %472 : vector<4x1xf32> to vector<4x16xf32>
    %478 = vector.broadcast %476 : vector<1x16xf32> to vector<4x16xf32>
    %479 = arith.mulf %477, %478 : vector<4x16xf32>
    %480 = arith.addf %447, %479 : vector<4x16xf32>
    %c1_i32_129 = arith.constant 1 : i32
    %481 = tpu.dynamic_rotate %466 by %c1_i32_129 dim 0 : vector<24x128xf32>, i32 -> vector<24x128xf32>
    %c23_i32_130 = arith.constant 23 : i32
    %482 = tpu.dynamic_rotate %466 by %c23_i32_130 dim 0 : vector<24x128xf32>, i32 -> vector<24x128xf32>
    %c1_i32_131 = arith.constant 1 : i32
    %483 = tpu.dynamic_rotate %466 by %c1_i32_131 dim 1 : vector<24x128xf32>, i32 -> vector<24x128xf32>
    %c127_i32_132 = arith.constant 127 : i32
    %484 = tpu.dynamic_rotate %466 by %c127_i32_132 dim 1 : vector<24x128xf32>, i32 -> vector<24x128xf32>
    %485 = arith.addf %481, %482 : vector<24x128xf32>
    %486 = arith.addf %483, %484 : vector<24x128xf32>
    %487 = arith.addf %485, %486 : vector<24x128xf32>
    %cst_133 = arith.constant 4.000000e+00 : f32
    %488 = vector.broadcast %cst_133 : f32 to vector<24x128xf32>
    %489 = arith.mulf %488, %466 : vector<24x128xf32>
    %490 = arith.subf %487, %489 : vector<24x128xf32>
    %491 = arith.mulf %4, %466 : vector<24x128xf32>
    %492 = arith.mulf %6, %433 : vector<24x128xf32>
    %493 = arith.subf %491, %492 : vector<24x128xf32>
    %494 = arith.mulf %8, %490 : vector<24x128xf32>
    %495 = arith.addf %493, %494 : vector<24x128xf32>
    %c14 = arith.constant 14 : index
    %c0_134 = arith.constant 0 : index
    %496 = vector.load %arg1[%c14, %c0_134] : memref<16x128xf32, #tpu.memory_space<vmem>>, vector<1x128xf32>
    %497 = vector.broadcast %496 : vector<1x128xf32> to vector<24x128xf32>
    %498 = arith.mulf %14, %497 : vector<24x128xf32>
    %499 = arith.addf %495, %498 : vector<24x128xf32>
    %500 = vector.shape_cast %499 : vector<24x128xf32> to vector<1x24x128xf32>
    %501 = vector.broadcast %500 : vector<1x24x128xf32> to vector<4x24x128xf32>
    %502 = arith.mulf %501, %9 : vector<4x24x128xf32>
    %cst_135 = arith.constant dense<0.000000e+00> : vector<4x128xf32>
    %503 = vector.multi_reduction <add>, %502, %cst_135 [1] : vector<4x24x128xf32> to vector<4x128xf32>
    %cst_136 = arith.constant dense<0.000000e+00> : vector<4xf32>
    %504 = vector.multi_reduction <add>, %503, %cst_136 [1] : vector<4x128xf32> to vector<4xf32>
    %505 = vector.shape_cast %504 : vector<4xf32> to vector<4x1xf32>
    %c14_i32 = arith.constant 14 : i32
    %506 = vector.broadcast %c14_i32 : i32 to vector<1x16xi32>
    %507 = arith.cmpi eq, %15, %506 : vector<1x16xi32>
    %508 = arith.extui %507 : vector<1x16xi1> to vector<1x16xi32>
    %509 = arith.sitofp %508 : vector<1x16xi32> to vector<1x16xf32>
    %510 = vector.broadcast %505 : vector<4x1xf32> to vector<4x16xf32>
    %511 = vector.broadcast %509 : vector<1x16xf32> to vector<4x16xf32>
    %512 = arith.mulf %510, %511 : vector<4x16xf32>
    %513 = arith.addf %480, %512 : vector<4x16xf32>
    %c1_i32_137 = arith.constant 1 : i32
    %514 = tpu.dynamic_rotate %499 by %c1_i32_137 dim 0 : vector<24x128xf32>, i32 -> vector<24x128xf32>
    %c23_i32_138 = arith.constant 23 : i32
    %515 = tpu.dynamic_rotate %499 by %c23_i32_138 dim 0 : vector<24x128xf32>, i32 -> vector<24x128xf32>
    %c1_i32_139 = arith.constant 1 : i32
    %516 = tpu.dynamic_rotate %499 by %c1_i32_139 dim 1 : vector<24x128xf32>, i32 -> vector<24x128xf32>
    %c127_i32_140 = arith.constant 127 : i32
    %517 = tpu.dynamic_rotate %499 by %c127_i32_140 dim 1 : vector<24x128xf32>, i32 -> vector<24x128xf32>
    %518 = arith.addf %514, %515 : vector<24x128xf32>
    %519 = arith.addf %516, %517 : vector<24x128xf32>
    %520 = arith.addf %518, %519 : vector<24x128xf32>
    %cst_141 = arith.constant 4.000000e+00 : f32
    %521 = vector.broadcast %cst_141 : f32 to vector<24x128xf32>
    %522 = arith.mulf %521, %499 : vector<24x128xf32>
    %523 = arith.subf %520, %522 : vector<24x128xf32>
    %524 = arith.mulf %4, %499 : vector<24x128xf32>
    %525 = arith.mulf %6, %466 : vector<24x128xf32>
    %526 = arith.subf %524, %525 : vector<24x128xf32>
    %527 = arith.mulf %8, %523 : vector<24x128xf32>
    %528 = arith.addf %526, %527 : vector<24x128xf32>
    %c15 = arith.constant 15 : index
    %c0_142 = arith.constant 0 : index
    %529 = vector.load %arg1[%c15, %c0_142] : memref<16x128xf32, #tpu.memory_space<vmem>>, vector<1x128xf32>
    %530 = vector.broadcast %529 : vector<1x128xf32> to vector<24x128xf32>
    %531 = arith.mulf %14, %530 : vector<24x128xf32>
    %532 = arith.addf %528, %531 : vector<24x128xf32>
    %533 = vector.shape_cast %532 : vector<24x128xf32> to vector<1x24x128xf32>
    %534 = vector.broadcast %533 : vector<1x24x128xf32> to vector<4x24x128xf32>
    %535 = arith.mulf %534, %9 : vector<4x24x128xf32>
    %cst_143 = arith.constant dense<0.000000e+00> : vector<4x128xf32>
    %536 = vector.multi_reduction <add>, %535, %cst_143 [1] : vector<4x24x128xf32> to vector<4x128xf32>
    %cst_144 = arith.constant dense<0.000000e+00> : vector<4xf32>
    %537 = vector.multi_reduction <add>, %536, %cst_144 [1] : vector<4x128xf32> to vector<4xf32>
    %538 = vector.shape_cast %537 : vector<4xf32> to vector<4x1xf32>
    %c15_i32 = arith.constant 15 : i32
    %539 = vector.broadcast %c15_i32 : i32 to vector<1x16xi32>
    %540 = arith.cmpi eq, %15, %539 : vector<1x16xi32>
    %541 = arith.extui %540 : vector<1x16xi1> to vector<1x16xi32>
    %542 = arith.sitofp %541 : vector<1x16xi32> to vector<1x16xf32>
    %543 = vector.broadcast %538 : vector<4x1xf32> to vector<4x16xf32>
    %544 = vector.broadcast %542 : vector<1x16xf32> to vector<4x16xf32>
    %545 = arith.mulf %543, %544 : vector<4x16xf32>
    %546 = arith.addf %513, %545 : vector<4x16xf32>
    %c0_145 = arith.constant 0 : index
    %c0_146 = arith.constant 0 : index
    %547 = vector.load %arg5[%c0_145, %c0_146] : memref<24x128xf32, #tpu.memory_space<vmem>>, vector<24x128xf32>
    tpu.vector_store %arg5[%c0_145, %c0_146], %532 {strides = array<i32>} : memref<24x128xf32, #tpu.memory_space<vmem>>, vector<24x128xf32>,
    %c0_147 = arith.constant 0 : index
    %c0_148 = arith.constant 0 : index
    %548 = vector.load %arg6[%c0_147, %c0_148] : memref<24x128xf32, #tpu.memory_space<vmem>>, vector<24x128xf32>
    tpu.vector_store %arg6[%c0_147, %c0_148], %499 {strides = array<i32>} : memref<24x128xf32, #tpu.memory_space<vmem>>, vector<24x128xf32>,
    %549 = arith.mulf %546, %546 : vector<4x16xf32>
    %c0_149 = arith.constant 0 : index
    %c0_150 = arith.constant 0 : index
    %550 = vector.load %arg4[%c0_149, %c0_150] : memref<4x16xf32, #tpu.memory_space<vmem>>, vector<4x16xf32>
    tpu.vector_store %arg4[%c0_149, %c0_150], %549 {strides = array<i32>} : memref<4x16xf32, #tpu.memory_space<vmem>>, vector<4x16xf32>,
    return
  }
  func.func @transform_0(%arg0: i32) -> (i32, i32) {
    %c0_i32 = arith.constant 0 : i32
    %c0_i32_0 = arith.constant 0 : i32
    return %arg0, %c0_i32 : i32, i32
  }
  func.func @transform_1(%arg0: i32) -> (i32, i32, i32) {
    %c0_i32 = arith.constant 0 : i32
    %c0_i32_0 = arith.constant 0 : i32
    %c0_i32_1 = arith.constant 0 : i32
    %c0_i32_2 = arith.constant 0 : i32
    return %c0_i32, %c0_i32_0, %c0_i32_1 : i32, i32, i32
  }
  func.func @transform_2(%arg0: i32) -> (i32, i32, i32) {
    %c0_i32 = arith.constant 0 : i32
    %c0_i32_0 = arith.constant 0 : i32
    %c0_i32_1 = arith.constant 0 : i32
    %c0_i32_2 = arith.constant 0 : i32
    return %c0_i32, %c0_i32_0, %c0_i32_1 : i32, i32, i32
  }
  func.func @transform_3(%arg0: i32) -> (i32, i32) {
    %c0_i32 = arith.constant 0 : i32
    %c0_i32_0 = arith.constant 0 : i32
    return %c0_i32, %arg0 : i32, i32
  }
}

</mosaic_0001>

<llo_original>
// kernel: tpu_custom_call.1
$region0: #{tpu_custom_call.1}
  #allocation0 [shape = 'u32[]', space=smem, size = 0x4, offset = 0x4, fixed_abs, tag = 'smem constant byte address 0x4 - core index']
  #allocation1 [shape = 'u32[144,128]{1,0:T(1,128)}', space=vmem, size = 0x12000, scoped, tag = 'internal scratch']
  #allocation2 [shape = 'f32[24,128]{1,0:T(8,128)}', space=vmem, size = 0x3000, scoped, tag = 'scratch operand']
  #allocation3 [shape = 'f32[24,128]{1,0:T(8,128)}', space=vmem, size = 0x3000, scoped, tag = 'scratch operand']
  %s0 = inlined_call_operand.hbm [shape: f32[16,128], index: 0, kind: input, shape index: {}]
  %s1 = inlined_call_operand.hbm [shape: f32[3,24,128], index: 1, kind: input, shape index: {}]
  %s2 = inlined_call_operand.hbm [shape: f32[4,24,128], index: 2, kind: input, shape index: {}]
  %s3 = inlined_call_operand.hbm [shape: f32[4,16], index: 3, kind: output, shape index: {}]
  %s4 = sld [smem:[#allocation0]]
  $region38: #{tpu_custom_call.1} parent=0
    _
  %s6 = ssub.s32 1, %s4
  %s7 = scalar_select 0, %s6, %s4
  $region1: #{tpu_custom_call.1} parent=0
    #allocation4 [shape = 'u8[8192]{0}', space=vmem, size = 0x2000, scoped, tag = 'input window, operand 0, single buffered']
    #allocation5 [shape = 's32[1]{0}', space=sflag, size = 0x4, scoped, tag = 'scoped memory for tpu_custom_call.1']
    #allocation6 [shape = 's32[1]{0}', space=sflag, size = 0x4, scoped, tag = 'scoped memory for tpu_custom_call.1']
    #allocation7 [shape = 'u8[36864]{0}', space=vmem, size = 0x9000, scoped, tag = 'input window, operand 1, single buffered']
    #allocation8 [shape = 's32[1]{0}', space=sflag, size = 0x4, scoped, tag = 'scoped memory for tpu_custom_call.1']
    #allocation9 [shape = 'u8[49152]{0}', space=vmem, size = 0xc000, scoped, tag = 'input window, operand 2, single buffered']
    #allocation10 [shape = 'u8[2048]{0}', space=vmem, size = 0x800, scoped, tag = 'output window, operand 0, single buffered']
    %8 = vsyncpa [#allocation5], 0
    %9 = vsyncpa [#allocation8], 0
    %10 = vsyncpa [#allocation6], 0
    // Predicated region
    $region2: #{tpu_custom_call.1} parent=1 // pred_check
      _
    $region3: #{tpu_custom_call.1} parent=1 // pred_check_branch
      %12 = sbr.rel (0) target = $region5
    $region4: #{tpu_custom_call.1} parent=1 // pred_region
      %s14 = ssub.s32 256, 256
      %15 = vsyncadd [#allocation5], %s14
      %s16 = sshll.u32 [#allocation4], 4
      %s17 = int_to_ptr.vmem [resolvable:$true] %s16
      %22 = dma.hbm_to_vmem [thread:$0]  %s0, 256, %s17, [#allocation5], 128, 128, 8
    $region5: #{tpu_custom_call.1} parent=1 // pred_fallthru
      _
    // Predicated region
    $region6: #{tpu_custom_call.1} parent=1 // pred_check
      _
    $region7: #{tpu_custom_call.1} parent=1 // pred_check_branch
      %24 = sbr.rel (0) target = $region9
    $region8: #{tpu_custom_call.1} parent=1 // pred_region
      %s26 = ssub.s32 1152, 1152
      %27 = vsyncadd [#allocation8], %s26
      %s28 = sshll.u32 [#allocation7], 4
      %s29 = int_to_ptr.vmem [resolvable:$true] %s28
      %34 = dma.hbm_to_vmem [thread:$0]  %s1, 1152, %s29, [#allocation8], 128, 128, 8
    $region9: #{tpu_custom_call.1} parent=1 // pred_fallthru
      _
    // Predicated region
    $region10: #{tpu_custom_call.1} parent=1 // pred_check
      _
    $region11: #{tpu_custom_call.1} parent=1 // pred_check_branch
      %36 = sbr.rel (0) target = $region13
    $region12: #{tpu_custom_call.1} parent=1 // pred_region
      %s38 = ssub.s32 1536, 1536
      %39 = vsyncadd [#allocation8], %s38
      %s40 = sshll.u32 [#allocation9], 4
      %s41 = int_to_ptr.vmem [resolvable:$true] %s40
      %46 = dma.hbm_to_vmem [thread:$0]  %s2, 1536, %s41, [#allocation8], 128, 128, 8
    $region13: #{tpu_custom_call.1} parent=1 // pred_fallthru
      _
    // Predicated region
    $region14: #{tpu_custom_call.1} parent=1 // pred_check
      _
    $region15: #{tpu_custom_call.1} parent=1 // pred_check_branch
      %48 = sbr.rel (0) target = $region17
    $region16: #{tpu_custom_call.1} parent=1 // pred_region
      %49 = dma.done [#allocation5], 256
    $region17: #{tpu_custom_call.1} parent=1 // pred_fallthru
      _
    // Predicated region
    $region18: #{tpu_custom_call.1} parent=1 // pred_check
      _
    $region19: #{tpu_custom_call.1} parent=1 // pred_check_branch
      %51 = sbr.rel (0) target = $region21
    $region20: #{tpu_custom_call.1} parent=1 // pred_region
      %52 = dma.done [#allocation8], 1152
    $region21: #{tpu_custom_call.1} parent=1 // pred_fallthru
      _
    // Predicated region
    $region22: #{tpu_custom_call.1} parent=1 // pred_check
      _
    $region23: #{tpu_custom_call.1} parent=1 // pred_check_branch
      %54 = sbr.rel (0) target = $region25
    $region24: #{tpu_custom_call.1} parent=1 // pred_region
      %55 = dma.done [#allocation8], 1536
    $region25: #{tpu_custom_call.1} parent=1 // pred_fallthru
      _
    %p56 = scmp.eq.s32.totalorder 0, 0
    // Predicated region
    $region26: #{tpu_custom_call.1} parent=1 // pred_check
      %p57 = pneg %p56
    $region27: #{tpu_custom_call.1} parent=1 // pred_check_branch
      %59 = sbr.rel (%p57) target = $region29
    $region28: #{tpu_custom_call.1} parent=1 // pred_region
      %60 = vst [vmem:[#allocation2] sm:$0xff] 0.0
      %61 = vst [vmem:[#allocation2 + $0x8] sm:$0xff] 0.0
      %62 = vst [vmem:[#allocation2 + $0x10] sm:$0xff] 0.0
      %63 = vst [vmem:[#allocation3] sm:$0xff] 0.0
      %64 = vst [vmem:[#allocation3 + $0x8] sm:$0xff] 0.0
      %65 = vst [vmem:[#allocation3 + $0x10] sm:$0xff] 0.0
    $region29: #{tpu_custom_call.1} parent=1 // pred_fallthru
      _
    %v66 = vld [vmem:[#allocation7] sm:$0xff]
    %v67 = vld [vmem:[#allocation7 + $0x8] sm:$0xff]
    %v68 = vld [vmem:[#allocation7 + $0x10] sm:$0xff]
    %s69 = scalar_lea.vmem [#allocation7], 24
    %v70 = vld [vmem:[%s69] sm:$0xff]
    %v71 = vld [vmem:[%s69 + $0x8] sm:$0xff]
    %v72 = vld [vmem:[%s69 + $0x10] sm:$0xff]
    %s73 = scalar_lea.vmem [#allocation7], 48
    %v74 = vld [vmem:[%s73] sm:$0xff]
    %v75 = vld [vmem:[%s73 + $0x8] sm:$0xff]
    %v76 = vld [vmem:[%s73 + $0x10] sm:$0xff]
    %v77 = vld [vmem:[#allocation9] sm:$0xff]
    %v78 = vld [vmem:[#allocation9 + $0x8] sm:$0xff]
    %v79 = vld [vmem:[#allocation9 + $0x10] sm:$0xff]
    %v80 = vld [vmem:[#allocation9 + $0x18] sm:$0xff]
    %v81 = vld [vmem:[#allocation9 + $0x20] sm:$0xff]
    %v82 = vld [vmem:[#allocation9 + $0x28] sm:$0xff]
    %v83 = vld [vmem:[#allocation9 + $0x30] sm:$0xff]
    %v84 = vld [vmem:[#allocation9 + $0x38] sm:$0xff]
    %v85 = vld [vmem:[#allocation9 + $0x40] sm:$0xff]
    %v86 = vld [vmem:[#allocation9 + $0x48] sm:$0xff]
    %v87 = vld [vmem:[#allocation9 + $0x50] sm:$0xff]
    %v88 = vld [vmem:[#allocation9 + $0x58] sm:$0xff]
    %v89 = vlaneseq
    %v90 = vshrl.u32 %v89, 7
    %v91 = vadd.s32 %v90, 8
    %v92 = vadd.s32 %v90, 16
    %vm93 = vcmp.eq.s32.totalorder %v90, 9
    %vm94 = vcmp.eq.s32.totalorder %v91, 9
    %vm95 = vcmp.eq.s32.totalorder %v92, 9
    %v96 = vsel %vm93, 1, 0
    %v97 = vsel %vm94, 1, 0
    %v98 = vsel %vm95, 1, 0
    %v99 = vcvt.s32.f32 %v96
    %v100 = vcvt.s32.f32 %v97
    %v101 = vcvt.s32.f32 %v98
    %v102 = vlaneseq
    %v103 = vand.u32 %v102, 127
    %v104 = vld [vmem:[#allocation2] sm:$0xff]
    %v105 = vld [vmem:[#allocation2 + $0x8] sm:$0xff]
    %v106 = vld [vmem:[#allocation2 + $0x10] sm:$0xff]
    %v107 = vld [vmem:[#allocation3] sm:$0xff]
    %v108 = vld [vmem:[#allocation3 + $0x8] sm:$0xff]
    %v109 = vld [vmem:[#allocation3 + $0x10] sm:$0xff]
    %v110 = vrot.slane %v104, 7
    %v111 = vrot.slane %v105, 7
    %v112 = vrot.slane %v106, 7
    %vm113 = vcmp.lt.s32.totalorder %v90, 1
    %v114 = vsel %vm113, %v111, %v112
    %v115 = vsel %vm113, %v110, %v111
    %v116 = vsel %vm113, %v112, %v110
    %v117 = vrot.slane %v104, 1
    %v118 = vrot.slane %v105, 1
    %v119 = vrot.slane %v106, 1
    %vm120 = vcmp.lt.s32.totalorder %v90, 7
    %v121 = vsel %vm120, %v118, %v119
    %v122 = vsel %vm120, %v117, %v118
    %v123 = vsel %vm120, %v119, %v117
    %124 = vrot.lane.b32.xlu0 %v104, 1
    %v125 = vpop.permute.xlu0 %124
    %126 = vrot.lane.b32.xlu0 %v105, 1
    %v127 = vpop.permute.xlu0 %126
    %128 = vrot.lane.b32.xlu0 %v106, 1
    %v129 = vpop.permute.xlu0 %128
    %130 = vrot.lane.b32.xlu0 %v104, 127
    %v131 = vpop.permute.xlu0 %130
    %132 = vrot.lane.b32.xlu0 %v105, 127
    %v133 = vpop.permute.xlu0 %132
    %134 = vrot.lane.b32.xlu0 %v106, 127
    %v135 = vpop.permute.xlu0 %134
    %v136 = vadd.f32 %v116, %v122
    %v137 = vadd.f32 %v115, %v121
    %v138 = vadd.f32 %v114, %v123
    %v139 = vadd.f32 %v125, %v131
    %v140 = vadd.f32 %v127, %v133
    %v141 = vadd.f32 %v129, %v135
    %v142 = vadd.f32 %v136, %v139
    %v143 = vadd.f32 %v137, %v140
    %v144 = vadd.f32 %v138, %v141
    %v145 = vmul.f32 %v104, 4.0
    %v146 = vmul.f32 %v105, 4.0
    %v147 = vmul.f32 %v106, 4.0
    %v148 = vsub.f32 %v142, %v145
    %v149 = vsub.f32 %v143, %v146
    %v150 = vsub.f32 %v144, %v147
    %v151 = vmul.f32 %v66, %v104
    %v152 = vmul.f32 %v67, %v105
    %v153 = vmul.f32 %v68, %v106
    %v154 = vmul.f32 %v70, %v107
    %v155 = vmul.f32 %v71, %v108
    %v156 = vmul.f32 %v72, %v109
    %v157 = vsub.f32 %v151, %v154
    %v158 = vsub.f32 %v152, %v155
    %v159 = vsub.f32 %v153, %v156
    %v160 = vmul.f32 %v74, %v148
    %v161 = vmul.f32 %v75, %v149
    %v162 = vmul.f32 %v76, %v150
    %v163 = vadd.f32 %v157, %v160
    %v164 = vadd.f32 %v158, %v161
    %v165 = vadd.f32 %v159, %v162
    %v166 = vld [vmem:[#allocation4] sm:$0x1]
    %v167 = vlaneseq
    %v168 = vshrl.u32 %v167, 7
    %v169 = vsub.s32 0, %v168
    %v170 = vrot.slane %v166, %v169
    %v171 = vmul.f32 %v99, %v170
    %v172 = vmul.f32 %v100, %v170
    %v173 = vmul.f32 %v101, %v170
    %v174 = vadd.f32 %v163, %v171
    %v175 = vadd.f32 %v164, %v172
    %v176 = vadd.f32 %v165, %v173
    %v177 = vmul.f32 %v174, %v77
    %v178 = vmul.f32 %v175, %v78
    %v179 = vmul.f32 %v176, %v79
    %v180 = vmul.f32 %v174, %v80
    %v181 = vmul.f32 %v175, %v81
    %v182 = vmul.f32 %v176, %v82
    %v183 = vmul.f32 %v174, %v83
    %v184 = vmul.f32 %v175, %v84
    %v185 = vmul.f32 %v176, %v85
    %v186 = vmul.f32 %v174, %v86
    %v187 = vmul.f32 %v175, %v87
    %v188 = vmul.f32 %v176, %v88
    %v189 = vadd.f32 %v177, %v178
    %v190 = vadd.f32 %v189, %v179
    %v191 = vrot.slane %v190, 4
    %v192 = vadd.f32 %v190, %v191
    %v193 = vrot.slane %v192, 2
    %v194 = vadd.f32 %v192, %v193
    %v195 = vrot.slane %v194, 1
    %v196 = vadd.f32 %v194, %v195
    %v197 = vadd.f32 %v180, %v181
    %v198 = vadd.f32 %v197, %v182
    %v199 = vrot.slane %v198, 4
    %v200 = vadd.f32 %v198, %v199
    %v201 = vrot.slane %v200, 2
    %v202 = vadd.f32 %v200, %v201
    %v203 = vrot.slane %v202, 1
    %v204 = vadd.f32 %v202, %v203
    %v205 = vadd.f32 %v183, %v184
    %v206 = vadd.f32 %v205, %v185
    %v207 = vrot.slane %v206, 4
    %v208 = vadd.f32 %v206, %v207
    %v209 = vrot.slane %v208, 2
    %v210 = vadd.f32 %v208, %v209
    %v211 = vrot.slane %v210, 1
    %v212 = vadd.f32 %v210, %v211
    %v213 = vadd.f32 %v186, %v187
    %v214 = vadd.f32 %v213, %v188
    %v215 = vrot.slane %v214, 4
    %v216 = vadd.f32 %v214, %v215
    %v217 = vrot.slane %v216, 2
    %v218 = vadd.f32 %v216, %v217
    %v219 = vrot.slane %v218, 1
    %v220 = vadd.f32 %v218, %v219
    %vm225 = vcmask 1041409
    %v226 = vsel %vm225, %v204, %v196
    %vm227 = vcmask 1042434
    %v228 = vsel %vm227, %v212, %v226
    %vm229 = vcmask 1043459
    %v230 = vsel %vm229, %v220, %v228
    %vm232 = vcmask 1043456
    %v233 = vsel %vm232, %v230, 0.0
    %234 = vadd.xlane.f32.xlu0 %v233
    %v235 = vpop.xlane.xlu0 %234
    %vm236 = vcmp.eq.s32.totalorder %v103, 0
    %v237 = vsel %vm236, 1, 0
    %v238 = vcvt.s32.f32 %v237
    %v239 = vmul.f32 %v235, %v238
    %v240 = vadd.f32 %v239, 0.0
    %v241 = vrot.slane %v174, 7
    %v242 = vrot.slane %v175, 7
    %v243 = vrot.slane %v176, 7
    %v244 = vsel %vm113, %v242, %v243
    %v245 = vsel %vm113, %v241, %v242
    %v246 = vsel %vm113, %v243, %v241
    %v247 = vrot.slane %v174, 1
    %v248 = vrot.slane %v175, 1
    %v249 = vrot.slane %v176, 1
    %v250 = vsel %vm120, %v248, %v249
    %v251 = vsel %vm120, %v247, %v248
    %v252 = vsel %vm120, %v249, %v247
    %253 = vrot.lane.b32.xlu0 %v174, 1
    %v254 = vpop.permute.xlu0 %253
    %255 = vrot.lane.b32.xlu0 %v175, 1
    %v256 = vpop.permute.xlu0 %255
    %257 = vrot.lane.b32.xlu0 %v176, 1
    %v258 = vpop.permute.xlu0 %257
    %259 = vrot.lane.b32.xlu0 %v174, 127
    %v260 = vpop.permute.xlu0 %259
    %261 = vrot.lane.b32.xlu0 %v175, 127
    %v262 = vpop.permute.xlu0 %261
    %263 = vrot.lane.b32.xlu0 %v176, 127
    %v264 = vpop.permute.xlu0 %263
    %v265 = vadd.f32 %v246, %v251
    %v266 = vadd.f32 %v245, %v250
    %v267 = vadd.f32 %v244, %v252
    %v268 = vadd.f32 %v254, %v260
    %v269 = vadd.f32 %v256, %v262
    %v270 = vadd.f32 %v258, %v264
    %v271 = vadd.f32 %v265, %v268
    %v272 = vadd.f32 %v266, %v269
    %v273 = vadd.f32 %v267, %v270
    %v274 = vmul.f32 %v174, 4.0
    %v275 = vmul.f32 %v175, 4.0
    %v276 = vmul.f32 %v176, 4.0
    %v277 = vsub.f32 %v271, %v274
    %v278 = vsub.f32 %v272, %v275
    %v279 = vsub.f32 %v273, %v276
    %v280 = vmul.f32 %v66, %v174
    %v281 = vmul.f32 %v67, %v175
    %v282 = vmul.f32 %v68, %v176
    %v283 = vmul.f32 %v70, %v104
    %v284 = vmul.f32 %v71, %v105
    %v285 = vmul.f32 %v72, %v106
    %v286 = vsub.f32 %v280, %v283
    %v287 = vsub.f32 %v281, %v284
    %v288 = vsub.f32 %v282, %v285
    %v289 = vmul.f32 %v74, %v277
    %v290 = vmul.f32 %v75, %v278
    %v291 = vmul.f32 %v76, %v279
    %v292 = vadd.f32 %v286, %v289
    %v293 = vadd.f32 %v287, %v290
    %v294 = vadd.f32 %v288, %v291
    %v295 = vld [vmem:[#allocation4 + $0x1] sm:$0x1]
    %v296 = vlaneseq
    %v297 = vshrl.u32 %v296, 7
    %v298 = vsub.s32 0, %v297
    %v299 = vrot.slane %v295, %v298
    %v300 = vmul.f32 %v99, %v299
    %v301 = vmul.f32 %v100, %v299
    %v302 = vmul.f32 %v101, %v299
    %v303 = vadd.f32 %v292, %v300
    %v304 = vadd.f32 %v293, %v301
    %v305 = vadd.f32 %v294, %v302
    %v306 = vmul.f32 %v303, %v77
    %v307 = vmul.f32 %v304, %v78
    %v308 = vmul.f32 %v305, %v79
    %v309 = vmul.f32 %v303, %v80
    %v310 = vmul.f32 %v304, %v81
    %v311 = vmul.f32 %v305, %v82
    %v312 = vmul.f32 %v303, %v83
    %v313 = vmul.f32 %v304, %v84
    %v314 = vmul.f32 %v305, %v85
    %v315 = vmul.f32 %v303, %v86
    %v316 = vmul.f32 %v304, %v87
    %v317 = vmul.f32 %v305, %v88
    %v318 = vadd.f32 %v306, %v307
    %v319 = vadd.f32 %v318, %v308
    %v320 = vrot.slane %v319, 4
    %v321 = vadd.f32 %v319, %v320
    %v322 = vrot.slane %v321, 2
    %v323 = vadd.f32 %v321, %v322
    %v324 = vrot.slane %v323, 1
    %v325 = vadd.f32 %v323, %v324
    %v326 = vadd.f32 %v309, %v310
    %v327 = vadd.f32 %v326, %v311
    %v328 = vrot.slane %v327, 4
    %v329 = vadd.f32 %v327, %v328
    %v330 = vrot.slane %v329, 2
    %v331 = vadd.f32 %v329, %v330
    %v332 = vrot.slane %v331, 1
    %v333 = vadd.f32 %v331, %v332
    %v334 = vadd.f32 %v312, %v313
    %v335 = vadd.f32 %v334, %v314
    %v336 = vrot.slane %v335, 4
    %v337 = vadd.f32 %v335, %v336
    %v338 = vrot.slane %v337, 2
    %v339 = vadd.f32 %v337, %v338
    %v340 = vrot.slane %v339, 1
    %v341 = vadd.f32 %v339, %v340
    %v342 = vadd.f32 %v315, %v316
    %v343 = vadd.f32 %v342, %v317
    %v344 = vrot.slane %v343, 4
    %v345 = vadd.f32 %v343, %v344
    %v346 = vrot.slane %v345, 2
    %v347 = vadd.f32 %v345, %v346
    %v348 = vrot.slane %v347, 1
    %v349 = vadd.f32 %v347, %v348
    %v354 = vsel %vm225, %v333, %v325
    %v355 = vsel %vm227, %v341, %v354
    %v356 = vsel %vm229, %v349, %v355
    %v358 = vsel %vm232, %v356, 0.0
    %359 = vadd.xlane.f32.xlu0 %v358
    %v360 = vpop.xlane.xlu0 %359
    %vm361 = vcmp.eq.s32.totalorder %v103, 1
    %v362 = vsel %vm361, 1, 0
    %v363 = vcvt.s32.f32 %v362
    %v364 = vmul.f32 %v360, %v363
    %v365 = vadd.f32 %v240, %v364
    %v366 = vrot.slane %v303, 7
    %v367 = vrot.slane %v304, 7
    %v368 = vrot.slane %v305, 7
    %v369 = vsel %vm113, %v367, %v368
    %v370 = vsel %vm113, %v366, %v367
    %v371 = vsel %vm113, %v368, %v366
    %v372 = vrot.slane %v303, 1
    %v373 = vrot.slane %v304, 1
    %v374 = vrot.slane %v305, 1
    %v375 = vsel %vm120, %v373, %v374
    %v376 = vsel %vm120, %v372, %v373
    %v377 = vsel %vm120, %v374, %v372
    %378 = vrot.lane.b32.xlu0 %v303, 1
    %v379 = vpop.permute.xlu0 %378
    %380 = vrot.lane.b32.xlu0 %v304, 1
    %v381 = vpop.permute.xlu0 %380
    %382 = vrot.lane.b32.xlu0 %v305, 1
    %v383 = vpop.permute.xlu0 %382
    %384 = vrot.lane.b32.xlu0 %v303, 127
    %v385 = vpop.permute.xlu0 %384
    %386 = vrot.lane.b32.xlu0 %v304, 127
    %v387 = vpop.permute.xlu0 %386
    %388 = vrot.lane.b32.xlu0 %v305, 127
    %v389 = vpop.permute.xlu0 %388
    %v390 = vadd.f32 %v371, %v376
    %v391 = vadd.f32 %v370, %v375
    %v392 = vadd.f32 %v369, %v377
    %v393 = vadd.f32 %v379, %v385
    %v394 = vadd.f32 %v381, %v387
    %v395 = vadd.f32 %v383, %v389
    %v396 = vadd.f32 %v390, %v393
    %v397 = vadd.f32 %v391, %v394
    %v398 = vadd.f32 %v392, %v395
    %v399 = vmul.f32 %v303, 4.0
    %v400 = vmul.f32 %v304, 4.0
    %v401 = vmul.f32 %v305, 4.0
    %v402 = vsub.f32 %v396, %v399
    %v403 = vsub.f32 %v397, %v400
    %v404 = vsub.f32 %v398, %v401
    %v405 = vmul.f32 %v66, %v303
    %v406 = vmul.f32 %v67, %v304
    %v407 = vmul.f32 %v68, %v305
    %v408 = vmul.f32 %v70, %v174
    %v409 = vmul.f32 %v71, %v175
    %v410 = vmul.f32 %v72, %v176
    %v411 = vsub.f32 %v405, %v408
    %v412 = vsub.f32 %v406, %v409
    %v413 = vsub.f32 %v407, %v410
    %v414 = vmul.f32 %v74, %v402
    %v415 = vmul.f32 %v75, %v403
    %v416 = vmul.f32 %v76, %v404
    %v417 = vadd.f32 %v411, %v414
    %v418 = vadd.f32 %v412, %v415
    %v419 = vadd.f32 %v413, %v416
    %v420 = vld [vmem:[#allocation4 + $0x2] sm:$0x1]
    %v421 = vlaneseq
    %v422 = vshrl.u32 %v421, 7
    %v423 = vsub.s32 0, %v422
    %v424 = vrot.slane %v420, %v423
    %v425 = vmul.f32 %v99, %v424
    %v426 = vmul.f32 %v100, %v424
    %v427 = vmul.f32 %v101, %v424
    %v428 = vadd.f32 %v417, %v425
    %v429 = vadd.f32 %v418, %v426
    %v430 = vadd.f32 %v419, %v427
    %v431 = vmul.f32 %v428, %v77
    %v432 = vmul.f32 %v429, %v78
    %v433 = vmul.f32 %v430, %v79
    %v434 = vmul.f32 %v428, %v80
    %v435 = vmul.f32 %v429, %v81
    %v436 = vmul.f32 %v430, %v82
    %v437 = vmul.f32 %v428, %v83
    %v438 = vmul.f32 %v429, %v84
    %v439 = vmul.f32 %v430, %v85
    %v440 = vmul.f32 %v428, %v86
    %v441 = vmul.f32 %v429, %v87
    %v442 = vmul.f32 %v430, %v88
    %v443 = vadd.f32 %v431, %v432
    %v444 = vadd.f32 %v443, %v433
    %v445 = vrot.slane %v444, 4
    %v446 = vadd.f32 %v444, %v445
    %v447 = vrot.slane %v446, 2
    %v448 = vadd.f32 %v446, %v447
    %v449 = vrot.slane %v448, 1
    %v450 = vadd.f32 %v448, %v449
    %v451 = vadd.f32 %v434, %v435
    %v452 = vadd.f32 %v451, %v436
    %v453 = vrot.slane %v452, 4
    %v454 = vadd.f32 %v452, %v453
    %v455 = vrot.slane %v454, 2
    %v456 = vadd.f32 %v454, %v455
    %v457 = vrot.slane %v456, 1
    %v458 = vadd.f32 %v456, %v457
    %v459 = vadd.f32 %v437, %v438
    %v460 = vadd.f32 %v459, %v439
    %v461 = vrot.slane %v460, 4
    %v462 = vadd.f32 %v460, %v461
    %v463 = vrot.slane %v462, 2
    %v464 = vadd.f32 %v462, %v463
    %v465 = vrot.slane %v464, 1
    %v466 = vadd.f32 %v464, %v465
    %v467 = vadd.f32 %v440, %v441
    %v468 = vadd.f32 %v467, %v442
    %v469 = vrot.slane %v468, 4
    %v470 = vadd.f32 %v468, %v469
    %v471 = vrot.slane %v470, 2
    %v472 = vadd.f32 %v470, %v471
    %v473 = vrot.slane %v472, 1
    %v474 = vadd.f32 %v472, %v473
    %v479 = vsel %vm225, %v458, %v450
    %v480 = vsel %vm227, %v466, %v479
    %v481 = vsel %vm229, %v474, %v480
    %v483 = vsel %vm232, %v481, 0.0
    %484 = vadd.xlane.f32.xlu0 %v483
    %v485 = vpop.xlane.xlu0 %484
    %vm486 = vcmp.eq.s32.totalorder %v103, 2
    %v487 = vsel %vm486, 1, 0
    %v488 = vcvt.s32.f32 %v487
    %v489 = vmul.f32 %v485, %v488
    %v490 = vadd.f32 %v365, %v489
    %v491 = vrot.slane %v428, 7
    %v492 = vrot.slane %v429, 7
    %v493 = vrot.slane %v430, 7
    %v494 = vsel %vm113, %v492, %v493
    %v495 = vsel %vm113, %v491, %v492
    %v496 = vsel %vm113, %v493, %v491
    %v497 = vrot.slane %v428, 1
    %v498 = vrot.slane %v429, 1
    %v499 = vrot.slane %v430, 1
    %v500 = vsel %vm120, %v498, %v499
    %v501 = vsel %vm120, %v497, %v498
    %v502 = vsel %vm120, %v499, %v497
    %503 = vrot.lane.b32.xlu0 %v428, 1
    %v504 = vpop.permute.xlu0 %503
    %505 = vrot.lane.b32.xlu0 %v429, 1
    %v506 = vpop.permute.xlu0 %505
    %507 = vrot.lane.b32.xlu0 %v430, 1
    %v508 = vpop.permute.xlu0 %507
    %509 = vrot.lane.b32.xlu0 %v428, 127
    %v510 = vpop.permute.xlu0 %509
    %511 = vrot.lane.b32.xlu0 %v429, 127
    %v512 = vpop.permute.xlu0 %511
    %513 = vrot.lane.b32.xlu0 %v430, 127
    %v514 = vpop.permute.xlu0 %513
    %v515 = vadd.f32 %v496, %v501
    %v516 = vadd.f32 %v495, %v500
    %v517 = vadd.f32 %v494, %v502
    %v518 = vadd.f32 %v504, %v510
    %v519 = vadd.f32 %v506, %v512
    %v520 = vadd.f32 %v508, %v514
    %v521 = vadd.f32 %v515, %v518
    %v522 = vadd.f32 %v516, %v519
    %v523 = vadd.f32 %v517, %v520
    %v524 = vmul.f32 %v428, 4.0
    %v525 = vmul.f32 %v429, 4.0
    %v526 = vmul.f32 %v430, 4.0
    %v527 = vsub.f32 %v521, %v524
    %v528 = vsub.f32 %v522, %v525
    %v529 = vsub.f32 %v523, %v526
    %v530 = vmul.f32 %v66, %v428
    %v531 = vmul.f32 %v67, %v429
    %v532 = vmul.f32 %v68, %v430
    %v533 = vmul.f32 %v70, %v303
    %v534 = vmul.f32 %v71, %v304
    %v535 = vmul.f32 %v72, %v305
    %v536 = vsub.f32 %v530, %v533
    %v537 = vsub.f32 %v531, %v534
    %v538 = vsub.f32 %v532, %v535
    %v539 = vmul.f32 %v74, %v527
    %v540 = vmul.f32 %v75, %v528
    %v541 = vmul.f32 %v76, %v529
    %v542 = vadd.f32 %v536, %v539
    %v543 = vadd.f32 %v537, %v540
    %v544 = vadd.f32 %v538, %v541
    %v545 = vld [vmem:[#allocation4 + $0x3] sm:$0x1]
    %v546 = vlaneseq
    %v547 = vshrl.u32 %v546, 7
    %v548 = vsub.s32 0, %v547
    %v549 = vrot.slane %v545, %v548
    %v550 = vmul.f32 %v99, %v549
    %v551 = vmul.f32 %v100, %v549
    %v552 = vmul.f32 %v101, %v549
    %v553 = vadd.f32 %v542, %v550
    %v554 = vadd.f32 %v543, %v551
    %v555 = vadd.f32 %v544, %v552
    %v556 = vmul.f32 %v553, %v77
    %v557 = vmul.f32 %v554, %v78
    %v558 = vmul.f32 %v555, %v79
    %v559 = vmul.f32 %v553, %v80
    %v560 = vmul.f32 %v554, %v81
    %v561 = vmul.f32 %v555, %v82
    %v562 = vmul.f32 %v553, %v83
    %v563 = vmul.f32 %v554, %v84
    %v564 = vmul.f32 %v555, %v85
    %v565 = vmul.f32 %v553, %v86
    %v566 = vmul.f32 %v554, %v87
    %v567 = vmul.f32 %v555, %v88
    %v568 = vadd.f32 %v556, %v557
    %v569 = vadd.f32 %v568, %v558
    %v570 = vrot.slane %v569, 4
    %v571 = vadd.f32 %v569, %v570
    %v572 = vrot.slane %v571, 2
    %v573 = vadd.f32 %v571, %v572
    %v574 = vrot.slane %v573, 1
    %v575 = vadd.f32 %v573, %v574
    %v576 = vadd.f32 %v559, %v560
    %v577 = vadd.f32 %v576, %v561
    %v578 = vrot.slane %v577, 4
    %v579 = vadd.f32 %v577, %v578
    %v580 = vrot.slane %v579, 2
    %v581 = vadd.f32 %v579, %v580
    %v582 = vrot.slane %v581, 1
    %v583 = vadd.f32 %v581, %v582
    %v584 = vadd.f32 %v562, %v563
    %v585 = vadd.f32 %v584, %v564
    %v586 = vrot.slane %v585, 4
    %v587 = vadd.f32 %v585, %v586
    %v588 = vrot.slane %v587, 2
    %v589 = vadd.f32 %v587, %v588
    %v590 = vrot.slane %v589, 1
    %v591 = vadd.f32 %v589, %v590
    %v592 = vadd.f32 %v565, %v566
    %v593 = vadd.f32 %v592, %v567
    %v594 = vrot.slane %v593, 4
    %v595 = vadd.f32 %v593, %v594
    %v596 = vrot.slane %v595, 2
    %v597 = vadd.f32 %v595, %v596
    %v598 = vrot.slane %v597, 1
    %v599 = vadd.f32 %v597, %v598
    %v604 = vsel %vm225, %v583, %v575
    %v605 = vsel %vm227, %v591, %v604
    %v606 = vsel %vm229, %v599, %v605
    %v608 = vsel %vm232, %v606, 0.0
    %609 = vadd.xlane.f32.xlu0 %v608
    %v610 = vpop.xlane.xlu0 %609
    %vm611 = vcmp.eq.s32.totalorder %v103, 3
    %v612 = vsel %vm611, 1, 0
    %v613 = vcvt.s32.f32 %v612
    %v614 = vmul.f32 %v610, %v613
    %v615 = vadd.f32 %v490, %v614
    %v616 = vrot.slane %v553, 7
    %v617 = vrot.slane %v554, 7
    %v618 = vrot.slane %v555, 7
    %v619 = vsel %vm113, %v617, %v618
    %v620 = vsel %vm113, %v616, %v617
    %v621 = vsel %vm113, %v618, %v616
    %v622 = vrot.slane %v553, 1
    %v623 = vrot.slane %v554, 1
    %v624 = vrot.slane %v555, 1
    %v625 = vsel %vm120, %v623, %v624
    %v626 = vsel %vm120, %v622, %v623
    %v627 = vsel %vm120, %v624, %v622
    %628 = vrot.lane.b32.xlu0 %v553, 1
    %v629 = vpop.permute.xlu0 %628
    %630 = vrot.lane.b32.xlu0 %v554, 1
    %v631 = vpop.permute.xlu0 %630
    %632 = vrot.lane.b32.xlu0 %v555, 1
    %v633 = vpop.permute.xlu0 %632
    %634 = vrot.lane.b32.xlu0 %v553, 127
    %v635 = vpop.permute.xlu0 %634
    %636 = vrot.lane.b32.xlu0 %v554, 127
    %v637 = vpop.permute.xlu0 %636
    %638 = vrot.lane.b32.xlu0 %v555, 127
    %v639 = vpop.permute.xlu0 %638
    %v640 = vadd.f32 %v621, %v626
    %v641 = vadd.f32 %v620, %v625
    %v642 = vadd.f32 %v619, %v627
    %v643 = vadd.f32 %v629, %v635
    %v644 = vadd.f32 %v631, %v637
    %v645 = vadd.f32 %v633, %v639
    %v646 = vadd.f32 %v640, %v643
    %v647 = vadd.f32 %v641, %v644
    %v648 = vadd.f32 %v642, %v645
    %v649 = vmul.f32 %v553, 4.0
    %v650 = vmul.f32 %v554, 4.0
    %v651 = vmul.f32 %v555, 4.0
    %v652 = vsub.f32 %v646, %v649
    %v653 = vsub.f32 %v647, %v650
    %v654 = vsub.f32 %v648, %v651
    %v655 = vmul.f32 %v66, %v553
    %v656 = vmul.f32 %v67, %v554
    %v657 = vmul.f32 %v68, %v555
    %v658 = vmul.f32 %v70, %v428
    %v659 = vmul.f32 %v71, %v429
    %v660 = vmul.f32 %v72, %v430
    %v661 = vsub.f32 %v655, %v658
    %v662 = vsub.f32 %v656, %v659
    %v663 = vsub.f32 %v657, %v660
    %v664 = vmul.f32 %v74, %v652
    %v665 = vmul.f32 %v75, %v653
    %v666 = vmul.f32 %v76, %v654
    %v667 = vadd.f32 %v661, %v664
    %v668 = vadd.f32 %v662, %v665
    %v669 = vadd.f32 %v663, %v666
    %v670 = vld [vmem:[#allocation4 + $0x4] sm:$0x1]
    %v671 = vlaneseq
    %v672 = vshrl.u32 %v671, 7
    %v673 = vsub.s32 0, %v672
    %v674 = vrot.slane %v670, %v673
    %v675 = vmul.f32 %v99, %v674
    %v676 = vmul.f32 %v100, %v674
    %v677 = vmul.f32 %v101, %v674
    %v678 = vadd.f32 %v667, %v675
    %v679 = vadd.f32 %v668, %v676
    %v680 = vadd.f32 %v669, %v677
    %v681 = vmul.f32 %v678, %v77
    %v682 = vmul.f32 %v679, %v78
    %v683 = vmul.f32 %v680, %v79
    %v684 = vmul.f32 %v678, %v80
    %v685 = vmul.f32 %v679, %v81
    %v686 = vmul.f32 %v680, %v82
    %v687 = vmul.f32 %v678, %v83
    %v688 = vmul.f32 %v679, %v84
    %v689 = vmul.f32 %v680, %v85
    %v690 = vmul.f32 %v678, %v86
    %v691 = vmul.f32 %v679, %v87
    %v692 = vmul.f32 %v680, %v88
    %v693 = vadd.f32 %v681, %v682
    %v694 = vadd.f32 %v693, %v683
    %v695 = vrot.slane %v694, 4
    %v696 = vadd.f32 %v694, %v695
    %v697 = vrot.slane %v696, 2
    %v698 = vadd.f32 %v696, %v697
    %v699 = vrot.slane %v698, 1
    %v700 = vadd.f32 %v698, %v699
    %v701 = vadd.f32 %v684, %v685
    %v702 = vadd.f32 %v701, %v686
    %v703 = vrot.slane %v702, 4
    %v704 = vadd.f32 %v702, %v703
    %v705 = vrot.slane %v704, 2
    %v706 = vadd.f32 %v704, %v705
    %v707 = vrot.slane %v706, 1
    %v708 = vadd.f32 %v706, %v707
    %v709 = vadd.f32 %v687, %v688
    %v710 = vadd.f32 %v709, %v689
    %v711 = vrot.slane %v710, 4
    %v712 = vadd.f32 %v710, %v711
    %v713 = vrot.slane %v712, 2
    %v714 = vadd.f32 %v712, %v713
    %v715 = vrot.slane %v714, 1
    %v716 = vadd.f32 %v714, %v715
    %v717 = vadd.f32 %v690, %v691
    %v718 = vadd.f32 %v717, %v692
    %v719 = vrot.slane %v718, 4
    %v720 = vadd.f32 %v718, %v719
    %v721 = vrot.slane %v720, 2
    %v722 = vadd.f32 %v720, %v721
    %v723 = vrot.slane %v722, 1
    %v724 = vadd.f32 %v722, %v723
    %v729 = vsel %vm225, %v708, %v700
    %v730 = vsel %vm227, %v716, %v729
    %v731 = vsel %vm229, %v724, %v730
    %v733 = vsel %vm232, %v731, 0.0
    %734 = vadd.xlane.f32.xlu0 %v733
    %v735 = vpop.xlane.xlu0 %734
    %vm736 = vcmp.eq.s32.totalorder %v103, 4
    %v737 = vsel %vm736, 1, 0
    %v738 = vcvt.s32.f32 %v737
    %v739 = vmul.f32 %v735, %v738
    %v740 = vadd.f32 %v615, %v739
    %v741 = vrot.slane %v678, 7
    %v742 = vrot.slane %v679, 7
    %v743 = vrot.slane %v680, 7
    %v744 = vsel %vm113, %v742, %v743
    %v745 = vsel %vm113, %v741, %v742
    %v746 = vsel %vm113, %v743, %v741
    %v747 = vrot.slane %v678, 1
    %v748 = vrot.slane %v679, 1
    %v749 = vrot.slane %v680, 1
    %v750 = vsel %vm120, %v748, %v749
    %v751 = vsel %vm120, %v747, %v748
    %v752 = vsel %vm120, %v749, %v747
    %753 = vrot.lane.b32.xlu0 %v678, 1
    %v754 = vpop.permute.xlu0 %753
    %755 = vrot.lane.b32.xlu0 %v679, 1
    %v756 = vpop.permute.xlu0 %755
    %757 = vrot.lane.b32.xlu0 %v680, 1
    %v758 = vpop.permute.xlu0 %757
    %759 = vrot.lane.b32.xlu0 %v678, 127
    %v760 = vpop.permute.xlu0 %759
    %761 = vrot.lane.b32.xlu0 %v679, 127
    %v762 = vpop.permute.xlu0 %761
    %763 = vrot.lane.b32.xlu0 %v680, 127
    %v764 = vpop.permute.xlu0 %763
    %v765 = vadd.f32 %v746, %v751
    %v766 = vadd.f32 %v745, %v750
    %v767 = vadd.f32 %v744, %v752
    %v768 = vadd.f32 %v754, %v760
    %v769 = vadd.f32 %v756, %v762
    %v770 = vadd.f32 %v758, %v764
    %v771 = vadd.f32 %v765, %v768
    %v772 = vadd.f32 %v766, %v769
    %v773 = vadd.f32 %v767, %v770
    %v774 = vmul.f32 %v678, 4.0
    %v775 = vmul.f32 %v679, 4.0
    %v776 = vmul.f32 %v680, 4.0
    %v777 = vsub.f32 %v771, %v774
    %v778 = vsub.f32 %v772, %v775
    %v779 = vsub.f32 %v773, %v776
    %v780 = vmul.f32 %v66, %v678
    %v781 = vmul.f32 %v67, %v679
    %v782 = vmul.f32 %v68, %v680
    %v783 = vmul.f32 %v70, %v553
    %v784 = vmul.f32 %v71, %v554
    %v785 = vmul.f32 %v72, %v555
    %v786 = vsub.f32 %v780, %v783
    %v787 = vsub.f32 %v781, %v784
    %v788 = vsub.f32 %v782, %v785
    %v789 = vmul.f32 %v74, %v777
    %v790 = vmul.f32 %v75, %v778
    %v791 = vmul.f32 %v76, %v779
    %v792 = vadd.f32 %v786, %v789
    %v793 = vadd.f32 %v787, %v790
    %v794 = vadd.f32 %v788, %v791
    %v795 = vld [vmem:[#allocation4 + $0x5] sm:$0x1]
    %v796 = vlaneseq
    %v797 = vshrl.u32 %v796, 7
    %v798 = vsub.s32 0, %v797
    %v799 = vrot.slane %v795, %v798
    %v800 = vmul.f32 %v99, %v799
    %v801 = vmul.f32 %v100, %v799
    %v802 = vmul.f32 %v101, %v799
    %v803 = vadd.f32 %v792, %v800
    %v804 = vadd.f32 %v793, %v801
    %v805 = vadd.f32 %v794, %v802
    %v806 = vmul.f32 %v803, %v77
    %v807 = vmul.f32 %v804, %v78
    %v808 = vmul.f32 %v805, %v79
    %v809 = vmul.f32 %v803, %v80
    %v810 = vmul.f32 %v804, %v81
    %v811 = vmul.f32 %v805, %v82
    %v812 = vmul.f32 %v803, %v83
    %v813 = vmul.f32 %v804, %v84
    %v814 = vmul.f32 %v805, %v85
    %v815 = vmul.f32 %v803, %v86
    %v816 = vmul.f32 %v804, %v87
    %v817 = vmul.f32 %v805, %v88
    %v818 = vadd.f32 %v806, %v807
    %v819 = vadd.f32 %v818, %v808
    %v820 = vrot.slane %v819, 4
    %v821 = vadd.f32 %v819, %v820
    %v822 = vrot.slane %v821, 2
    %v823 = vadd.f32 %v821, %v822
    %v824 = vrot.slane %v823, 1
    %v825 = vadd.f32 %v823, %v824
    %v826 = vadd.f32 %v809, %v810
    %v827 = vadd.f32 %v826, %v811
    %v828 = vrot.slane %v827, 4
    %v829 = vadd.f32 %v827, %v828
    %v830 = vrot.slane %v829, 2
    %v831 = vadd.f32 %v829, %v830
    %v832 = vrot.slane %v831, 1
    %v833 = vadd.f32 %v831, %v832
    %v834 = vadd.f32 %v812, %v813
    %v835 = vadd.f32 %v834, %v814
    %v836 = vrot.slane %v835, 4
    %v837 = vadd.f32 %v835, %v836
    %v838 = vrot.slane %v837, 2
    %v839 = vadd.f32 %v837, %v838
    %v840 = vrot.slane %v839, 1
    %v841 = vadd.f32 %v839, %v840
    %v842 = vadd.f32 %v815, %v816
    %v843 = vadd.f32 %v842, %v817
    %v844 = vrot.slane %v843, 4
    %v845 = vadd.f32 %v843, %v844
    %v846 = vrot.slane %v845, 2
    %v847 = vadd.f32 %v845, %v846
    %v848 = vrot.slane %v847, 1
    %v849 = vadd.f32 %v847, %v848
    %v854 = vsel %vm225, %v833, %v825
    %v855 = vsel %vm227, %v841, %v854
    %v856 = vsel %vm229, %v849, %v855
    %v858 = vsel %vm232, %v856, 0.0
    %859 = vadd.xlane.f32.xlu0 %v858
    %v860 = vpop.xlane.xlu0 %859
    %vm861 = vcmp.eq.s32.totalorder %v103, 5
    %v862 = vsel %vm861, 1, 0
    %v863 = vcvt.s32.f32 %v862
    %v864 = vmul.f32 %v860, %v863
    %v865 = vadd.f32 %v740, %v864
    %v866 = vrot.slane %v803, 7
    %v867 = vrot.slane %v804, 7
    %v868 = vrot.slane %v805, 7
    %v869 = vsel %vm113, %v867, %v868
    %v870 = vsel %vm113, %v866, %v867
    %v871 = vsel %vm113, %v868, %v866
    %v872 = vrot.slane %v803, 1
    %v873 = vrot.slane %v804, 1
    %v874 = vrot.slane %v805, 1
    %v875 = vsel %vm120, %v873, %v874
    %v876 = vsel %vm120, %v872, %v873
    %v877 = vsel %vm120, %v874, %v872
    %878 = vrot.lane.b32.xlu0 %v803, 1
    %v879 = vpop.permute.xlu0 %878
    %880 = vrot.lane.b32.xlu0 %v804, 1
    %v881 = vpop.permute.xlu0 %880
    %882 = vrot.lane.b32.xlu0 %v805, 1
    %v883 = vpop.permute.xlu0 %882
    %884 = vrot.lane.b32.xlu0 %v803, 127
    %v885 = vpop.permute.xlu0 %884
    %886 = vrot.lane.b32.xlu0 %v804, 127
    %v887 = vpop.permute.xlu0 %886
    %888 = vrot.lane.b32.xlu0 %v805, 127
    %v889 = vpop.permute.xlu0 %888
    %v890 = vadd.f32 %v871, %v876
    %v891 = vadd.f32 %v870, %v875
    %v892 = vadd.f32 %v869, %v877
    %v893 = vadd.f32 %v879, %v885
    %v894 = vadd.f32 %v881, %v887
    %v895 = vadd.f32 %v883, %v889
    %v896 = vadd.f32 %v890, %v893
    %v897 = vadd.f32 %v891, %v894
    %v898 = vadd.f32 %v892, %v895
    %v899 = vmul.f32 %v803, 4.0
    %v900 = vmul.f32 %v804, 4.0
    %v901 = vmul.f32 %v805, 4.0
    %v902 = vsub.f32 %v896, %v899
    %v903 = vsub.f32 %v897, %v900
    %v904 = vsub.f32 %v898, %v901
    %v905 = vmul.f32 %v66, %v803
    %v906 = vmul.f32 %v67, %v804
    %v907 = vmul.f32 %v68, %v805
    %v908 = vmul.f32 %v70, %v678
    %v909 = vmul.f32 %v71, %v679
    %v910 = vmul.f32 %v72, %v680
    %v911 = vsub.f32 %v905, %v908
    %v912 = vsub.f32 %v906, %v909
    %v913 = vsub.f32 %v907, %v910
    %v914 = vmul.f32 %v74, %v902
    %v915 = vmul.f32 %v75, %v903
    %v916 = vmul.f32 %v76, %v904
    %v917 = vadd.f32 %v911, %v914
    %v918 = vadd.f32 %v912, %v915
    %v919 = vadd.f32 %v913, %v916
    %v920 = vld [vmem:[#allocation4 + $0x6] sm:$0x1]
    %v921 = vlaneseq
    %v922 = vshrl.u32 %v921, 7
    %v923 = vsub.s32 0, %v922
    %v924 = vrot.slane %v920, %v923
    %v925 = vmul.f32 %v99, %v924
    %v926 = vmul.f32 %v100, %v924
    %v927 = vmul.f32 %v101, %v924
    %v928 = vadd.f32 %v917, %v925
    %v929 = vadd.f32 %v918, %v926
    %v930 = vadd.f32 %v919, %v927
    %v931 = vmul.f32 %v928, %v77
    %v932 = vmul.f32 %v929, %v78
    %v933 = vmul.f32 %v930, %v79
    %v934 = vmul.f32 %v928, %v80
    %v935 = vmul.f32 %v929, %v81
    %v936 = vmul.f32 %v930, %v82
    %v937 = vmul.f32 %v928, %v83
    %v938 = vmul.f32 %v929, %v84
    %v939 = vmul.f32 %v930, %v85
    %v940 = vmul.f32 %v928, %v86
    %v941 = vmul.f32 %v929, %v87
    %v942 = vmul.f32 %v930, %v88
    %v943 = vadd.f32 %v931, %v932
    %v944 = vadd.f32 %v943, %v933
    %v945 = vrot.slane %v944, 4
    %v946 = vadd.f32 %v944, %v945
    %v947 = vrot.slane %v946, 2
    %v948 = vadd.f32 %v946, %v947
    %v949 = vrot.slane %v948, 1
    %v950 = vadd.f32 %v948, %v949
    %v951 = vadd.f32 %v934, %v935
    %v952 = vadd.f32 %v951, %v936
    %v953 = vrot.slane %v952, 4
    %v954 = vadd.f32 %v952, %v953
    %v955 = vrot.slane %v954, 2
    %v956 = vadd.f32 %v954, %v955
    %v957 = vrot.slane %v956, 1
    %v958 = vadd.f32 %v956, %v957
    %v959 = vadd.f32 %v937, %v938
    %v960 = vadd.f32 %v959, %v939
    %v961 = vrot.slane %v960, 4
    %v962 = vadd.f32 %v960, %v961
    %v963 = vrot.slane %v962, 2
    %v964 = vadd.f32 %v962, %v963
    %v965 = vrot.slane %v964, 1
    %v966 = vadd.f32 %v964, %v965
    %v967 = vadd.f32 %v940, %v941
    %v968 = vadd.f32 %v967, %v942
    %v969 = vrot.slane %v968, 4
    %v970 = vadd.f32 %v968, %v969
    %v971 = vrot.slane %v970, 2
    %v972 = vadd.f32 %v970, %v971
    %v973 = vrot.slane %v972, 1
    %v974 = vadd.f32 %v972, %v973
    %v979 = vsel %vm225, %v958, %v950
    %v980 = vsel %vm227, %v966, %v979
    %v981 = vsel %vm229, %v974, %v980
    %v983 = vsel %vm232, %v981, 0.0
    %984 = vadd.xlane.f32.xlu0 %v983
    %v985 = vpop.xlane.xlu0 %984
    %vm986 = vcmp.eq.s32.totalorder %v103, 6
    %v987 = vsel %vm986, 1, 0
    %v988 = vcvt.s32.f32 %v987
    %v989 = vmul.f32 %v985, %v988
    %v990 = vadd.f32 %v865, %v989
    %v991 = vrot.slane %v928, 7
    %v992 = vrot.slane %v929, 7
    %v993 = vrot.slane %v930, 7
    %v994 = vsel %vm113, %v992, %v993
    %v995 = vsel %vm113, %v991, %v992
    %v996 = vsel %vm113, %v993, %v991
    %v997 = vrot.slane %v928, 1
    %v998 = vrot.slane %v929, 1
    %v999 = vrot.slane %v930, 1
    %v1000 = vsel %vm120, %v998, %v999
    %v1001 = vsel %vm120, %v997, %v998
    %v1002 = vsel %vm120, %v999, %v997
    %1003 = vrot.lane.b32.xlu0 %v928, 1
    %v1004 = vpop.permute.xlu0 %1003
    %1005 = vrot.lane.b32.xlu0 %v929, 1
    %v1006 = vpop.permute.xlu0 %1005
    %1007 = vrot.lane.b32.xlu0 %v930, 1
    %v1008 = vpop.permute.xlu0 %1007
    %1009 = vrot.lane.b32.xlu0 %v928, 127
    %v1010 = vpop.permute.xlu0 %1009
    %1011 = vrot.lane.b32.xlu0 %v929, 127
    %v1012 = vpop.permute.xlu0 %1011
    %1013 = vrot.lane.b32.xlu0 %v930, 127
    %v1014 = vpop.permute.xlu0 %1013
    %v1015 = vadd.f32 %v996, %v1001
    %v1016 = vadd.f32 %v995, %v1000
    %v1017 = vadd.f32 %v994, %v1002
    %v1018 = vadd.f32 %v1004, %v1010
    %v1019 = vadd.f32 %v1006, %v1012
    %v1020 = vadd.f32 %v1008, %v1014
    %v1021 = vadd.f32 %v1015, %v1018
    %v1022 = vadd.f32 %v1016, %v1019
    %v1023 = vadd.f32 %v1017, %v1020
    %v1024 = vmul.f32 %v928, 4.0
    %v1025 = vmul.f32 %v929, 4.0
    %v1026 = vmul.f32 %v930, 4.0
    %v1027 = vsub.f32 %v1021, %v1024
    %v1028 = vsub.f32 %v1022, %v1025
    %v1029 = vsub.f32 %v1023, %v1026
    %v1030 = vmul.f32 %v66, %v928
    %v1031 = vmul.f32 %v67, %v929
    %v1032 = vmul.f32 %v68, %v930
    %v1033 = vmul.f32 %v70, %v803
    %v1034 = vmul.f32 %v71, %v804
    %v1035 = vmul.f32 %v72, %v805
    %v1036 = vsub.f32 %v1030, %v1033
    %v1037 = vsub.f32 %v1031, %v1034
    %v1038 = vsub.f32 %v1032, %v1035
    %v1039 = vmul.f32 %v74, %v1027
    %v1040 = vmul.f32 %v75, %v1028
    %v1041 = vmul.f32 %v76, %v1029
    %v1042 = vadd.f32 %v1036, %v1039
    %v1043 = vadd.f32 %v1037, %v1040
    %v1044 = vadd.f32 %v1038, %v1041
    %v1045 = vld [vmem:[#allocation4 + $0x7] sm:$0x1]
    %v1046 = vlaneseq
    %v1047 = vshrl.u32 %v1046, 7
    %v1048 = vsub.s32 0, %v1047
    %v1049 = vrot.slane %v1045, %v1048
    %v1050 = vmul.f32 %v99, %v1049
    %v1051 = vmul.f32 %v100, %v1049
    %v1052 = vmul.f32 %v101, %v1049
    %v1053 = vadd.f32 %v1042, %v1050
    %v1054 = vadd.f32 %v1043, %v1051
    %v1055 = vadd.f32 %v1044, %v1052
    %v1056 = vmul.f32 %v1053, %v77
    %v1057 = vmul.f32 %v1054, %v78
    %v1058 = vmul.f32 %v1055, %v79
    %v1059 = vmul.f32 %v1053, %v80
    %v1060 = vmul.f32 %v1054, %v81
    %v1061 = vmul.f32 %v1055, %v82
    %v1062 = vmul.f32 %v1053, %v83
    %v1063 = vmul.f32 %v1054, %v84
    %v1064 = vmul.f32 %v1055, %v85
    %v1065 = vmul.f32 %v1053, %v86
    %v1066 = vmul.f32 %v1054, %v87
    %v1067 = vmul.f32 %v1055, %v88
    %v1068 = vadd.f32 %v1056, %v1057
    %v1069 = vadd.f32 %v1068, %v1058
    %v1070 = vrot.slane %v1069, 4
    %v1071 = vadd.f32 %v1069, %v1070
    %v1072 = vrot.slane %v1071, 2
    %v1073 = vadd.f32 %v1071, %v1072
    %v1074 = vrot.slane %v1073, 1
    %v1075 = vadd.f32 %v1073, %v1074
    %v1076 = vadd.f32 %v1059, %v1060
    %v1077 = vadd.f32 %v1076, %v1061
    %v1078 = vrot.slane %v1077, 4
    %v1079 = vadd.f32 %v1077, %v1078
    %v1080 = vrot.slane %v1079, 2
    %v1081 = vadd.f32 %v1079, %v1080
    %v1082 = vrot.slane %v1081, 1
    %v1083 = vadd.f32 %v1081, %v1082
    %v1084 = vadd.f32 %v1062, %v1063
    %v1085 = vadd.f32 %v1084, %v1064
    %v1086 = vrot.slane %v1085, 4
    %v1087 = vadd.f32 %v1085, %v1086
    %v1088 = vrot.slane %v1087, 2
    %v1089 = vadd.f32 %v1087, %v1088
    %v1090 = vrot.slane %v1089, 1
    %v1091 = vadd.f32 %v1089, %v1090
    %v1092 = vadd.f32 %v1065, %v1066
    %v1093 = vadd.f32 %v1092, %v1067
    %v1094 = vrot.slane %v1093, 4
    %v1095 = vadd.f32 %v1093, %v1094
    %v1096 = vrot.slane %v1095, 2
    %v1097 = vadd.f32 %v1095, %v1096
    %v1098 = vrot.slane %v1097, 1
    %v1099 = vadd.f32 %v1097, %v1098
    %v1104 = vsel %vm225, %v1083, %v1075
    %v1105 = vsel %vm227, %v1091, %v1104
    %v1106 = vsel %vm229, %v1099, %v1105
    %v1108 = vsel %vm232, %v1106, 0.0
    %1109 = vadd.xlane.f32.xlu0 %v1108
    %v1110 = vpop.xlane.xlu0 %1109
    %vm1111 = vcmp.eq.s32.totalorder %v103, 7
    %v1112 = vsel %vm1111, 1, 0
    %v1113 = vcvt.s32.f32 %v1112
    %v1114 = vmul.f32 %v1110, %v1113
    %v1115 = vadd.f32 %v990, %v1114
    %v1116 = vrot.slane %v1053, 7
    %v1117 = vrot.slane %v1054, 7
    %v1118 = vrot.slane %v1055, 7
    %v1119 = vsel %vm113, %v1117, %v1118
    %v1120 = vsel %vm113, %v1116, %v1117
    %v1121 = vsel %vm113, %v1118, %v1116
    %v1122 = vrot.slane %v1053, 1
    %v1123 = vrot.slane %v1054, 1
    %v1124 = vrot.slane %v1055, 1
    %v1125 = vsel %vm120, %v1123, %v1124
    %v1126 = vsel %vm120, %v1122, %v1123
    %v1127 = vsel %vm120, %v1124, %v1122
    %1128 = vrot.lane.b32.xlu0 %v1053, 1
    %v1129 = vpop.permute.xlu0 %1128
    %1130 = vrot.lane.b32.xlu0 %v1054, 1
    %v1131 = vpop.permute.xlu0 %1130
    %1132 = vrot.lane.b32.xlu0 %v1055, 1
    %v1133 = vpop.permute.xlu0 %1132
    %1134 = vrot.lane.b32.xlu0 %v1053, 127
    %v1135 = vpop.permute.xlu0 %1134
    %1136 = vrot.lane.b32.xlu0 %v1054, 127
    %v1137 = vpop.permute.xlu0 %1136
    %1138 = vrot.lane.b32.xlu0 %v1055, 127
    %v1139 = vpop.permute.xlu0 %1138
    %v1140 = vadd.f32 %v1121, %v1126
    %v1141 = vadd.f32 %v1120, %v1125
    %v1142 = vadd.f32 %v1119, %v1127
    %v1143 = vadd.f32 %v1129, %v1135
    %v1144 = vadd.f32 %v1131, %v1137
    %v1145 = vadd.f32 %v1133, %v1139
    %v1146 = vadd.f32 %v1140, %v1143
    %v1147 = vadd.f32 %v1141, %v1144
    %v1148 = vadd.f32 %v1142, %v1145
    %v1149 = vmul.f32 %v1053, 4.0
    %v1150 = vmul.f32 %v1054, 4.0
    %v1151 = vmul.f32 %v1055, 4.0
    %v1152 = vsub.f32 %v1146, %v1149
    %v1153 = vsub.f32 %v1147, %v1150
    %v1154 = vsub.f32 %v1148, %v1151
    %v1155 = vmul.f32 %v66, %v1053
    %v1156 = vmul.f32 %v67, %v1054
    %v1157 = vmul.f32 %v68, %v1055
    %v1158 = vmul.f32 %v70, %v928
    %v1159 = vmul.f32 %v71, %v929
    %v1160 = vmul.f32 %v72, %v930
    %v1161 = vsub.f32 %v1155, %v1158
    %v1162 = vsub.f32 %v1156, %v1159
    %v1163 = vsub.f32 %v1157, %v1160
    %v1164 = vmul.f32 %v74, %v1152
    %v1165 = vmul.f32 %v75, %v1153
    %v1166 = vmul.f32 %v76, %v1154
    %v1167 = vadd.f32 %v1161, %v1164
    %v1168 = vadd.f32 %v1162, %v1165
    %v1169 = vadd.f32 %v1163, %v1166
    %v1170 = vld [vmem:[#allocation4 + $0x8] sm:$0x1]
    %v1171 = vlaneseq
    %v1172 = vshrl.u32 %v1171, 7
    %v1173 = vsub.s32 0, %v1172
    %v1174 = vrot.slane %v1170, %v1173
    %v1175 = vmul.f32 %v99, %v1174
    %v1176 = vmul.f32 %v100, %v1174
    %v1177 = vmul.f32 %v101, %v1174
    %v1178 = vadd.f32 %v1167, %v1175
    %v1179 = vadd.f32 %v1168, %v1176
    %v1180 = vadd.f32 %v1169, %v1177
    %v1181 = vmul.f32 %v1178, %v77
    %v1182 = vmul.f32 %v1179, %v78
    %v1183 = vmul.f32 %v1180, %v79
    %v1184 = vmul.f32 %v1178, %v80
    %v1185 = vmul.f32 %v1179, %v81
    %v1186 = vmul.f32 %v1180, %v82
    %v1187 = vmul.f32 %v1178, %v83
    %v1188 = vmul.f32 %v1179, %v84
    %v1189 = vmul.f32 %v1180, %v85
    %v1190 = vmul.f32 %v1178, %v86
    %v1191 = vmul.f32 %v1179, %v87
    %v1192 = vmul.f32 %v1180, %v88
    %v1193 = vadd.f32 %v1181, %v1182
    %v1194 = vadd.f32 %v1193, %v1183
    %v1195 = vrot.slane %v1194, 4
    %v1196 = vadd.f32 %v1194, %v1195
    %v1197 = vrot.slane %v1196, 2
    %v1198 = vadd.f32 %v1196, %v1197
    %v1199 = vrot.slane %v1198, 1
    %v1200 = vadd.f32 %v1198, %v1199
    %v1201 = vadd.f32 %v1184, %v1185
    %v1202 = vadd.f32 %v1201, %v1186
    %v1203 = vrot.slane %v1202, 4
    %v1204 = vadd.f32 %v1202, %v1203
    %v1205 = vrot.slane %v1204, 2
    %v1206 = vadd.f32 %v1204, %v1205
    %v1207 = vrot.slane %v1206, 1
    %v1208 = vadd.f32 %v1206, %v1207
    %v1209 = vadd.f32 %v1187, %v1188
    %v1210 = vadd.f32 %v1209, %v1189
    %v1211 = vrot.slane %v1210, 4
    %v1212 = vadd.f32 %v1210, %v1211
    %v1213 = vrot.slane %v1212, 2
    %v1214 = vadd.f32 %v1212, %v1213
    %v1215 = vrot.slane %v1214, 1
    %v1216 = vadd.f32 %v1214, %v1215
    %v1217 = vadd.f32 %v1190, %v1191
    %v1218 = vadd.f32 %v1217, %v1192
    %v1219 = vrot.slane %v1218, 4
    %v1220 = vadd.f32 %v1218, %v1219
    %v1221 = vrot.slane %v1220, 2
    %v1222 = vadd.f32 %v1220, %v1221
    %v1223 = vrot.slane %v1222, 1
    %v1224 = vadd.f32 %v1222, %v1223
    %v1229 = vsel %vm225, %v1208, %v1200
    %v1230 = vsel %vm227, %v1216, %v1229
    %v1231 = vsel %vm229, %v1224, %v1230
    %v1233 = vsel %vm232, %v1231, 0.0
    %1234 = vadd.xlane.f32.xlu0 %v1233
    %v1235 = vpop.xlane.xlu0 %1234
    %vm1236 = vcmp.eq.s32.totalorder %v103, 8
    %v1237 = vsel %vm1236, 1, 0
    %v1238 = vcvt.s32.f32 %v1237
    %v1239 = vmul.f32 %v1235, %v1238
    %v1240 = vadd.f32 %v1115, %v1239
    %v1241 = vrot.slane %v1178, 7
    %v1242 = vrot.slane %v1179, 7
    %v1243 = vrot.slane %v1180, 7
    %v1244 = vsel %vm113, %v1242, %v1243
    %v1245 = vsel %vm113, %v1241, %v1242
    %v1246 = vsel %vm113, %v1243, %v1241
    %v1247 = vrot.slane %v1178, 1
    %v1248 = vrot.slane %v1179, 1
    %v1249 = vrot.slane %v1180, 1
    %v1250 = vsel %vm120, %v1248, %v1249
    %v1251 = vsel %vm120, %v1247, %v1248
    %v1252 = vsel %vm120, %v1249, %v1247
    %1253 = vrot.lane.b32.xlu0 %v1178, 1
    %v1254 = vpop.permute.xlu0 %1253
    %1255 = vrot.lane.b32.xlu0 %v1179, 1
    %v1256 = vpop.permute.xlu0 %1255
    %1257 = vrot.lane.b32.xlu0 %v1180, 1
    %v1258 = vpop.permute.xlu0 %1257
    %1259 = vrot.lane.b32.xlu0 %v1178, 127
    %v1260 = vpop.permute.xlu0 %1259
    %1261 = vrot.lane.b32.xlu0 %v1179, 127
    %v1262 = vpop.permute.xlu0 %1261
    %1263 = vrot.lane.b32.xlu0 %v1180, 127
    %v1264 = vpop.permute.xlu0 %1263
    %v1265 = vadd.f32 %v1246, %v1251
    %v1266 = vadd.f32 %v1245, %v1250
    %v1267 = vadd.f32 %v1244, %v1252
    %v1268 = vadd.f32 %v1254, %v1260
    %v1269 = vadd.f32 %v1256, %v1262
    %v1270 = vadd.f32 %v1258, %v1264
    %v1271 = vadd.f32 %v1265, %v1268
    %v1272 = vadd.f32 %v1266, %v1269
    %v1273 = vadd.f32 %v1267, %v1270
    %v1274 = vmul.f32 %v1178, 4.0
    %v1275 = vmul.f32 %v1179, 4.0
    %v1276 = vmul.f32 %v1180, 4.0
    %v1277 = vsub.f32 %v1271, %v1274
    %v1278 = vsub.f32 %v1272, %v1275
    %v1279 = vsub.f32 %v1273, %v1276
    %v1280 = vmul.f32 %v66, %v1178
    %v1281 = vmul.f32 %v67, %v1179
    %v1282 = vmul.f32 %v68, %v1180
    %v1283 = vmul.f32 %v70, %v1053
    %v1284 = vmul.f32 %v71, %v1054
    %v1285 = vmul.f32 %v72, %v1055
    %v1286 = vsub.f32 %v1280, %v1283
    %v1287 = vsub.f32 %v1281, %v1284
    %v1288 = vsub.f32 %v1282, %v1285
    %v1289 = vmul.f32 %v74, %v1277
    %v1290 = vmul.f32 %v75, %v1278
    %v1291 = vmul.f32 %v76, %v1279
    %v1292 = vadd.f32 %v1286, %v1289
    %v1293 = vadd.f32 %v1287, %v1290
    %v1294 = vadd.f32 %v1288, %v1291
    %v1295 = vld [vmem:[#allocation4 + $0x9] sm:$0x1]
    %v1296 = vlaneseq
    %v1297 = vshrl.u32 %v1296, 7
    %v1298 = vsub.s32 0, %v1297
    %v1299 = vrot.slane %v1295, %v1298
    %v1300 = vmul.f32 %v99, %v1299
    %v1301 = vmul.f32 %v100, %v1299
    %v1302 = vmul.f32 %v101, %v1299
    %v1303 = vadd.f32 %v1292, %v1300
    %v1304 = vadd.f32 %v1293, %v1301
    %v1305 = vadd.f32 %v1294, %v1302
    %v1306 = vmul.f32 %v1303, %v77
    %v1307 = vmul.f32 %v1304, %v78
    %v1308 = vmul.f32 %v1305, %v79
    %v1309 = vmul.f32 %v1303, %v80
    %v1310 = vmul.f32 %v1304, %v81
    %v1311 = vmul.f32 %v1305, %v82
    %v1312 = vmul.f32 %v1303, %v83
    %v1313 = vmul.f32 %v1304, %v84
    %v1314 = vmul.f32 %v1305, %v85
    %v1315 = vmul.f32 %v1303, %v86
    %v1316 = vmul.f32 %v1304, %v87
    %v1317 = vmul.f32 %v1305, %v88
    %v1318 = vadd.f32 %v1306, %v1307
    %v1319 = vadd.f32 %v1318, %v1308
    %v1320 = vrot.slane %v1319, 4
    %v1321 = vadd.f32 %v1319, %v1320
    %v1322 = vrot.slane %v1321, 2
    %v1323 = vadd.f32 %v1321, %v1322
    %v1324 = vrot.slane %v1323, 1
    %v1325 = vadd.f32 %v1323, %v1324
    %v1326 = vadd.f32 %v1309, %v1310
    %v1327 = vadd.f32 %v1326, %v1311
    %v1328 = vrot.slane %v1327, 4
    %v1329 = vadd.f32 %v1327, %v1328
    %v1330 = vrot.slane %v1329, 2
    %v1331 = vadd.f32 %v1329, %v1330
    %v1332 = vrot.slane %v1331, 1
    %v1333 = vadd.f32 %v1331, %v1332
    %v1334 = vadd.f32 %v1312, %v1313
    %v1335 = vadd.f32 %v1334, %v1314
    %v1336 = vrot.slane %v1335, 4
    %v1337 = vadd.f32 %v1335, %v1336
    %v1338 = vrot.slane %v1337, 2
    %v1339 = vadd.f32 %v1337, %v1338
    %v1340 = vrot.slane %v1339, 1
    %v1341 = vadd.f32 %v1339, %v1340
    %v1342 = vadd.f32 %v1315, %v1316
    %v1343 = vadd.f32 %v1342, %v1317
    %v1344 = vrot.slane %v1343, 4
    %v1345 = vadd.f32 %v1343, %v1344
    %v1346 = vrot.slane %v1345, 2
    %v1347 = vadd.f32 %v1345, %v1346
    %v1348 = vrot.slane %v1347, 1
    %v1349 = vadd.f32 %v1347, %v1348
    %v1354 = vsel %vm225, %v1333, %v1325
    %v1355 = vsel %vm227, %v1341, %v1354
    %v1356 = vsel %vm229, %v1349, %v1355
    %v1358 = vsel %vm232, %v1356, 0.0
    %1359 = vadd.xlane.f32.xlu0 %v1358
    %v1360 = vpop.xlane.xlu0 %1359
    %vm1361 = vcmp.eq.s32.totalorder %v103, 9
    %v1362 = vsel %vm1361, 1, 0
    %v1363 = vcvt.s32.f32 %v1362
    %v1364 = vmul.f32 %v1360, %v1363
    %v1365 = vadd.f32 %v1240, %v1364
    %v1366 = vrot.slane %v1303, 7
    %v1367 = vrot.slane %v1304, 7
    %v1368 = vrot.slane %v1305, 7
    %v1369 = vsel %vm113, %v1367, %v1368
    %v1370 = vsel %vm113, %v1366, %v1367
    %v1371 = vsel %vm113, %v1368, %v1366
    %v1372 = vrot.slane %v1303, 1
    %v1373 = vrot.slane %v1304, 1
    %v1374 = vrot.slane %v1305, 1
    %v1375 = vsel %vm120, %v1373, %v1374
    %v1376 = vsel %vm120, %v1372, %v1373
    %v1377 = vsel %vm120, %v1374, %v1372
    %1378 = vrot.lane.b32.xlu0 %v1303, 1
    %v1379 = vpop.permute.xlu0 %1378
    %1380 = vrot.lane.b32.xlu0 %v1304, 1
    %v1381 = vpop.permute.xlu0 %1380
    %1382 = vrot.lane.b32.xlu0 %v1305, 1
    %v1383 = vpop.permute.xlu0 %1382
    %1384 = vrot.lane.b32.xlu0 %v1303, 127
    %v1385 = vpop.permute.xlu0 %1384
    %1386 = vrot.lane.b32.xlu0 %v1304, 127
    %v1387 = vpop.permute.xlu0 %1386
    %1388 = vrot.lane.b32.xlu0 %v1305, 127
    %v1389 = vpop.permute.xlu0 %1388
    %v1390 = vadd.f32 %v1371, %v1376
    %v1391 = vadd.f32 %v1370, %v1375
    %v1392 = vadd.f32 %v1369, %v1377
    %v1393 = vadd.f32 %v1379, %v1385
    %v1394 = vadd.f32 %v1381, %v1387
    %v1395 = vadd.f32 %v1383, %v1389
    %v1396 = vadd.f32 %v1390, %v1393
    %v1397 = vadd.f32 %v1391, %v1394
    %v1398 = vadd.f32 %v1392, %v1395
    %v1399 = vmul.f32 %v1303, 4.0
    %v1400 = vmul.f32 %v1304, 4.0
    %v1401 = vmul.f32 %v1305, 4.0
    %v1402 = vsub.f32 %v1396, %v1399
    %v1403 = vsub.f32 %v1397, %v1400
    %v1404 = vsub.f32 %v1398, %v1401
    %v1405 = vmul.f32 %v66, %v1303
    %v1406 = vmul.f32 %v67, %v1304
    %v1407 = vmul.f32 %v68, %v1305
    %v1408 = vmul.f32 %v70, %v1178
    %v1409 = vmul.f32 %v71, %v1179
    %v1410 = vmul.f32 %v72, %v1180
    %v1411 = vsub.f32 %v1405, %v1408
    %v1412 = vsub.f32 %v1406, %v1409
    %v1413 = vsub.f32 %v1407, %v1410
    %v1414 = vmul.f32 %v74, %v1402
    %v1415 = vmul.f32 %v75, %v1403
    %v1416 = vmul.f32 %v76, %v1404
    %v1417 = vadd.f32 %v1411, %v1414
    %v1418 = vadd.f32 %v1412, %v1415
    %v1419 = vadd.f32 %v1413, %v1416
    %v1420 = vld [vmem:[#allocation4 + $0xa] sm:$0x1]
    %v1421 = vlaneseq
    %v1422 = vshrl.u32 %v1421, 7
    %v1423 = vsub.s32 0, %v1422
    %v1424 = vrot.slane %v1420, %v1423
    %v1425 = vmul.f32 %v99, %v1424
    %v1426 = vmul.f32 %v100, %v1424
    %v1427 = vmul.f32 %v101, %v1424
    %v1428 = vadd.f32 %v1417, %v1425
    %v1429 = vadd.f32 %v1418, %v1426
    %v1430 = vadd.f32 %v1419, %v1427
    %v1431 = vmul.f32 %v1428, %v77
    %v1432 = vmul.f32 %v1429, %v78
    %v1433 = vmul.f32 %v1430, %v79
    %v1434 = vmul.f32 %v1428, %v80
    %v1435 = vmul.f32 %v1429, %v81
    %v1436 = vmul.f32 %v1430, %v82
    %v1437 = vmul.f32 %v1428, %v83
    %v1438 = vmul.f32 %v1429, %v84
    %v1439 = vmul.f32 %v1430, %v85
    %v1440 = vmul.f32 %v1428, %v86
    %v1441 = vmul.f32 %v1429, %v87
    %v1442 = vmul.f32 %v1430, %v88
    %v1443 = vadd.f32 %v1431, %v1432
    %v1444 = vadd.f32 %v1443, %v1433
    %v1445 = vrot.slane %v1444, 4
    %v1446 = vadd.f32 %v1444, %v1445
    %v1447 = vrot.slane %v1446, 2
    %v1448 = vadd.f32 %v1446, %v1447
    %v1449 = vrot.slane %v1448, 1
    %v1450 = vadd.f32 %v1448, %v1449
    %v1451 = vadd.f32 %v1434, %v1435
    %v1452 = vadd.f32 %v1451, %v1436
    %v1453 = vrot.slane %v1452, 4
    %v1454 = vadd.f32 %v1452, %v1453
    %v1455 = vrot.slane %v1454, 2
    %v1456 = vadd.f32 %v1454, %v1455
    %v1457 = vrot.slane %v1456, 1
    %v1458 = vadd.f32 %v1456, %v1457
    %v1459 = vadd.f32 %v1437, %v1438
    %v1460 = vadd.f32 %v1459, %v1439
    %v1461 = vrot.slane %v1460, 4
    %v1462 = vadd.f32 %v1460, %v1461
    %v1463 = vrot.slane %v1462, 2
    %v1464 = vadd.f32 %v1462, %v1463
    %v1465 = vrot.slane %v1464, 1
    %v1466 = vadd.f32 %v1464, %v1465
    %v1467 = vadd.f32 %v1440, %v1441
    %v1468 = vadd.f32 %v1467, %v1442
    %v1469 = vrot.slane %v1468, 4
    %v1470 = vadd.f32 %v1468, %v1469
    %v1471 = vrot.slane %v1470, 2
    %v1472 = vadd.f32 %v1470, %v1471
    %v1473 = vrot.slane %v1472, 1
    %v1474 = vadd.f32 %v1472, %v1473
    %v1479 = vsel %vm225, %v1458, %v1450
    %v1480 = vsel %vm227, %v1466, %v1479
    %v1481 = vsel %vm229, %v1474, %v1480
    %v1483 = vsel %vm232, %v1481, 0.0
    %1484 = vadd.xlane.f32.xlu0 %v1483
    %v1485 = vpop.xlane.xlu0 %1484
    %vm1486 = vcmp.eq.s32.totalorder %v103, 10
    %v1487 = vsel %vm1486, 1, 0
    %v1488 = vcvt.s32.f32 %v1487
    %v1489 = vmul.f32 %v1485, %v1488
    %v1490 = vadd.f32 %v1365, %v1489
    %v1491 = vrot.slane %v1428, 7
    %v1492 = vrot.slane %v1429, 7
    %v1493 = vrot.slane %v1430, 7
    %v1494 = vsel %vm113, %v1492, %v1493
    %v1495 = vsel %vm113, %v1491, %v1492
    %v1496 = vsel %vm113, %v1493, %v1491
    %v1497 = vrot.slane %v1428, 1
    %v1498 = vrot.slane %v1429, 1
    %v1499 = vrot.slane %v1430, 1
    %v1500 = vsel %vm120, %v1498, %v1499
    %v1501 = vsel %vm120, %v1497, %v1498
    %v1502 = vsel %vm120, %v1499, %v1497
    %1503 = vrot.lane.b32.xlu0 %v1428, 1
    %v1504 = vpop.permute.xlu0 %1503
    %1505 = vrot.lane.b32.xlu0 %v1429, 1
    %v1506 = vpop.permute.xlu0 %1505
    %1507 = vrot.lane.b32.xlu0 %v1430, 1
    %v1508 = vpop.permute.xlu0 %1507
    %1509 = vrot.lane.b32.xlu0 %v1428, 127
    %v1510 = vpop.permute.xlu0 %1509
    %1511 = vrot.lane.b32.xlu0 %v1429, 127
    %v1512 = vpop.permute.xlu0 %1511
    %1513 = vrot.lane.b32.xlu0 %v1430, 127
    %v1514 = vpop.permute.xlu0 %1513
    %v1515 = vadd.f32 %v1496, %v1501
    %v1516 = vadd.f32 %v1495, %v1500
    %v1517 = vadd.f32 %v1494, %v1502
    %v1518 = vadd.f32 %v1504, %v1510
    %v1519 = vadd.f32 %v1506, %v1512
    %v1520 = vadd.f32 %v1508, %v1514
    %v1521 = vadd.f32 %v1515, %v1518
    %v1522 = vadd.f32 %v1516, %v1519
    %v1523 = vadd.f32 %v1517, %v1520
    %v1524 = vmul.f32 %v1428, 4.0
    %v1525 = vmul.f32 %v1429, 4.0
    %v1526 = vmul.f32 %v1430, 4.0
    %v1527 = vsub.f32 %v1521, %v1524
    %v1528 = vsub.f32 %v1522, %v1525
    %v1529 = vsub.f32 %v1523, %v1526
    %v1530 = vmul.f32 %v66, %v1428
    %v1531 = vmul.f32 %v67, %v1429
    %v1532 = vmul.f32 %v68, %v1430
    %v1533 = vmul.f32 %v70, %v1303
    %v1534 = vmul.f32 %v71, %v1304
    %v1535 = vmul.f32 %v72, %v1305
    %v1536 = vsub.f32 %v1530, %v1533
    %v1537 = vsub.f32 %v1531, %v1534
    %v1538 = vsub.f32 %v1532, %v1535
    %v1539 = vmul.f32 %v74, %v1527
    %v1540 = vmul.f32 %v75, %v1528
    %v1541 = vmul.f32 %v76, %v1529
    %v1542 = vadd.f32 %v1536, %v1539
    %v1543 = vadd.f32 %v1537, %v1540
    %v1544 = vadd.f32 %v1538, %v1541
    %v1545 = vld [vmem:[#allocation4 + $0xb] sm:$0x1]
    %v1546 = vlaneseq
    %v1547 = vshrl.u32 %v1546, 7
    %v1548 = vsub.s32 0, %v1547
    %v1549 = vrot.slane %v1545, %v1548
    %v1550 = vmul.f32 %v99, %v1549
    %v1551 = vmul.f32 %v100, %v1549
    %v1552 = vmul.f32 %v101, %v1549
    %v1553 = vadd.f32 %v1542, %v1550
    %v1554 = vadd.f32 %v1543, %v1551
    %v1555 = vadd.f32 %v1544, %v1552
    %v1556 = vmul.f32 %v1553, %v77
    %v1557 = vmul.f32 %v1554, %v78
    %v1558 = vmul.f32 %v1555, %v79
    %v1559 = vmul.f32 %v1553, %v80
    %v1560 = vmul.f32 %v1554, %v81
    %v1561 = vmul.f32 %v1555, %v82
    %v1562 = vmul.f32 %v1553, %v83
    %v1563 = vmul.f32 %v1554, %v84
    %v1564 = vmul.f32 %v1555, %v85
    %v1565 = vmul.f32 %v1553, %v86
    %v1566 = vmul.f32 %v1554, %v87
    %v1567 = vmul.f32 %v1555, %v88
    %v1568 = vadd.f32 %v1556, %v1557
    %v1569 = vadd.f32 %v1568, %v1558
    %v1570 = vrot.slane %v1569, 4
    %v1571 = vadd.f32 %v1569, %v1570
    %v1572 = vrot.slane %v1571, 2
    %v1573 = vadd.f32 %v1571, %v1572
    %v1574 = vrot.slane %v1573, 1
    %v1575 = vadd.f32 %v1573, %v1574
    %v1576 = vadd.f32 %v1559, %v1560
    %v1577 = vadd.f32 %v1576, %v1561
    %v1578 = vrot.slane %v1577, 4
    %v1579 = vadd.f32 %v1577, %v1578
    %v1580 = vrot.slane %v1579, 2
    %v1581 = vadd.f32 %v1579, %v1580
    %v1582 = vrot.slane %v1581, 1
    %v1583 = vadd.f32 %v1581, %v1582
    %v1584 = vadd.f32 %v1562, %v1563
    %v1585 = vadd.f32 %v1584, %v1564
    %v1586 = vrot.slane %v1585, 4
    %v1587 = vadd.f32 %v1585, %v1586
    %v1588 = vrot.slane %v1587, 2
    %v1589 = vadd.f32 %v1587, %v1588
    %v1590 = vrot.slane %v1589, 1
    %v1591 = vadd.f32 %v1589, %v1590
    %v1592 = vadd.f32 %v1565, %v1566
    %v1593 = vadd.f32 %v1592, %v1567
    %v1594 = vrot.slane %v1593, 4
    %v1595 = vadd.f32 %v1593, %v1594
    %v1596 = vrot.slane %v1595, 2
    %v1597 = vadd.f32 %v1595, %v1596
    %v1598 = vrot.slane %v1597, 1
    %v1599 = vadd.f32 %v1597, %v1598
    %v1604 = vsel %vm225, %v1583, %v1575
    %v1605 = vsel %vm227, %v1591, %v1604
    %v1606 = vsel %vm229, %v1599, %v1605
    %v1608 = vsel %vm232, %v1606, 0.0
    %1609 = vadd.xlane.f32.xlu0 %v1608
    %v1610 = vpop.xlane.xlu0 %1609
    %vm1611 = vcmp.eq.s32.totalorder %v103, 11
    %v1612 = vsel %vm1611, 1, 0
    %v1613 = vcvt.s32.f32 %v1612
    %v1614 = vmul.f32 %v1610, %v1613
    %v1615 = vadd.f32 %v1490, %v1614
    %v1616 = vrot.slane %v1553, 7
    %v1617 = vrot.slane %v1554, 7
    %v1618 = vrot.slane %v1555, 7
    %v1619 = vsel %vm113, %v1617, %v1618
    %v1620 = vsel %vm113, %v1616, %v1617
    %v1621 = vsel %vm113, %v1618, %v1616
    %v1622 = vrot.slane %v1553, 1
    %v1623 = vrot.slane %v1554, 1
    %v1624 = vrot.slane %v1555, 1
    %v1625 = vsel %vm120, %v1623, %v1624
    %v1626 = vsel %vm120, %v1622, %v1623
    %v1627 = vsel %vm120, %v1624, %v1622
    %1628 = vrot.lane.b32.xlu0 %v1553, 1
    %v1629 = vpop.permute.xlu0 %1628
    %1630 = vrot.lane.b32.xlu0 %v1554, 1
    %v1631 = vpop.permute.xlu0 %1630
    %1632 = vrot.lane.b32.xlu0 %v1555, 1
    %v1633 = vpop.permute.xlu0 %1632
    %1634 = vrot.lane.b32.xlu0 %v1553, 127
    %v1635 = vpop.permute.xlu0 %1634
    %1636 = vrot.lane.b32.xlu0 %v1554, 127
    %v1637 = vpop.permute.xlu0 %1636
    %1638 = vrot.lane.b32.xlu0 %v1555, 127
    %v1639 = vpop.permute.xlu0 %1638
    %v1640 = vadd.f32 %v1621, %v1626
    %v1641 = vadd.f32 %v1620, %v1625
    %v1642 = vadd.f32 %v1619, %v1627
    %v1643 = vadd.f32 %v1629, %v1635
    %v1644 = vadd.f32 %v1631, %v1637
    %v1645 = vadd.f32 %v1633, %v1639
    %v1646 = vadd.f32 %v1640, %v1643
    %v1647 = vadd.f32 %v1641, %v1644
    %v1648 = vadd.f32 %v1642, %v1645
    %v1649 = vmul.f32 %v1553, 4.0
    %v1650 = vmul.f32 %v1554, 4.0
    %v1651 = vmul.f32 %v1555, 4.0
    %v1652 = vsub.f32 %v1646, %v1649
    %v1653 = vsub.f32 %v1647, %v1650
    %v1654 = vsub.f32 %v1648, %v1651
    %v1655 = vmul.f32 %v66, %v1553
    %v1656 = vmul.f32 %v67, %v1554
    %v1657 = vmul.f32 %v68, %v1555
    %v1658 = vmul.f32 %v70, %v1428
    %v1659 = vmul.f32 %v71, %v1429
    %v1660 = vmul.f32 %v72, %v1430
    %v1661 = vsub.f32 %v1655, %v1658
    %v1662 = vsub.f32 %v1656, %v1659
    %v1663 = vsub.f32 %v1657, %v1660
    %v1664 = vmul.f32 %v74, %v1652
    %v1665 = vmul.f32 %v75, %v1653
    %v1666 = vmul.f32 %v76, %v1654
    %v1667 = vadd.f32 %v1661, %v1664
    %v1668 = vadd.f32 %v1662, %v1665
    %v1669 = vadd.f32 %v1663, %v1666
    %v1670 = vld [vmem:[#allocation4 + $0xc] sm:$0x1]
    %v1671 = vlaneseq
    %v1672 = vshrl.u32 %v1671, 7
    %v1673 = vsub.s32 0, %v1672
    %v1674 = vrot.slane %v1670, %v1673
    %v1675 = vmul.f32 %v99, %v1674
    %v1676 = vmul.f32 %v100, %v1674
    %v1677 = vmul.f32 %v101, %v1674
    %v1678 = vadd.f32 %v1667, %v1675
    %v1679 = vadd.f32 %v1668, %v1676
    %v1680 = vadd.f32 %v1669, %v1677
    %v1681 = vmul.f32 %v1678, %v77
    %v1682 = vmul.f32 %v1679, %v78
    %v1683 = vmul.f32 %v1680, %v79
    %v1684 = vmul.f32 %v1678, %v80
    %v1685 = vmul.f32 %v1679, %v81
    %v1686 = vmul.f32 %v1680, %v82
    %v1687 = vmul.f32 %v1678, %v83
    %v1688 = vmul.f32 %v1679, %v84
    %v1689 = vmul.f32 %v1680, %v85
    %v1690 = vmul.f32 %v1678, %v86
    %v1691 = vmul.f32 %v1679, %v87
    %v1692 = vmul.f32 %v1680, %v88
    %v1693 = vadd.f32 %v1681, %v1682
    %v1694 = vadd.f32 %v1693, %v1683
    %v1695 = vrot.slane %v1694, 4
    %v1696 = vadd.f32 %v1694, %v1695
    %v1697 = vrot.slane %v1696, 2
    %v1698 = vadd.f32 %v1696, %v1697
    %v1699 = vrot.slane %v1698, 1
    %v1700 = vadd.f32 %v1698, %v1699
    %v1701 = vadd.f32 %v1684, %v1685
    %v1702 = vadd.f32 %v1701, %v1686
    %v1703 = vrot.slane %v1702, 4
    %v1704 = vadd.f32 %v1702, %v1703
    %v1705 = vrot.slane %v1704, 2
    %v1706 = vadd.f32 %v1704, %v1705
    %v1707 = vrot.slane %v1706, 1
    %v1708 = vadd.f32 %v1706, %v1707
    %v1709 = vadd.f32 %v1687, %v1688
    %v1710 = vadd.f32 %v1709, %v1689
    %v1711 = vrot.slane %v1710, 4
    %v1712 = vadd.f32 %v1710, %v1711
    %v1713 = vrot.slane %v1712, 2
    %v1714 = vadd.f32 %v1712, %v1713
    %v1715 = vrot.slane %v1714, 1
    %v1716 = vadd.f32 %v1714, %v1715
    %v1717 = vadd.f32 %v1690, %v1691
    %v1718 = vadd.f32 %v1717, %v1692
    %v1719 = vrot.slane %v1718, 4
    %v1720 = vadd.f32 %v1718, %v1719
    %v1721 = vrot.slane %v1720, 2
    %v1722 = vadd.f32 %v1720, %v1721
    %v1723 = vrot.slane %v1722, 1
    %v1724 = vadd.f32 %v1722, %v1723
    %v1729 = vsel %vm225, %v1708, %v1700
    %v1730 = vsel %vm227, %v1716, %v1729
    %v1731 = vsel %vm229, %v1724, %v1730
    %v1733 = vsel %vm232, %v1731, 0.0
    %1734 = vadd.xlane.f32.xlu0 %v1733
    %v1735 = vpop.xlane.xlu0 %1734
    %vm1736 = vcmp.eq.s32.totalorder %v103, 12
    %v1737 = vsel %vm1736, 1, 0
    %v1738 = vcvt.s32.f32 %v1737
    %v1739 = vmul.f32 %v1735, %v1738
    %v1740 = vadd.f32 %v1615, %v1739
    %v1741 = vrot.slane %v1678, 7
    %v1742 = vrot.slane %v1679, 7
    %v1743 = vrot.slane %v1680, 7
    %v1744 = vsel %vm113, %v1742, %v1743
    %v1745 = vsel %vm113, %v1741, %v1742
    %v1746 = vsel %vm113, %v1743, %v1741
    %v1747 = vrot.slane %v1678, 1
    %v1748 = vrot.slane %v1679, 1
    %v1749 = vrot.slane %v1680, 1
    %v1750 = vsel %vm120, %v1748, %v1749
    %v1751 = vsel %vm120, %v1747, %v1748
    %v1752 = vsel %vm120, %v1749, %v1747
    %1753 = vrot.lane.b32.xlu0 %v1678, 1
    %v1754 = vpop.permute.xlu0 %1753
    %1755 = vrot.lane.b32.xlu0 %v1679, 1
    %v1756 = vpop.permute.xlu0 %1755
    %1757 = vrot.lane.b32.xlu0 %v1680, 1
    %v1758 = vpop.permute.xlu0 %1757
    %1759 = vrot.lane.b32.xlu0 %v1678, 127
    %v1760 = vpop.permute.xlu0 %1759
    %1761 = vrot.lane.b32.xlu0 %v1679, 127
    %v1762 = vpop.permute.xlu0 %1761
    %1763 = vrot.lane.b32.xlu0 %v1680, 127
    %v1764 = vpop.permute.xlu0 %1763
    %v1765 = vadd.f32 %v1746, %v1751
    %v1766 = vadd.f32 %v1745, %v1750
    %v1767 = vadd.f32 %v1744, %v1752
    %v1768 = vadd.f32 %v1754, %v1760
    %v1769 = vadd.f32 %v1756, %v1762
    %v1770 = vadd.f32 %v1758, %v1764
    %v1771 = vadd.f32 %v1765, %v1768
    %v1772 = vadd.f32 %v1766, %v1769
    %v1773 = vadd.f32 %v1767, %v1770
    %v1774 = vmul.f32 %v1678, 4.0
    %v1775 = vmul.f32 %v1679, 4.0
    %v1776 = vmul.f32 %v1680, 4.0
    %v1777 = vsub.f32 %v1771, %v1774
    %v1778 = vsub.f32 %v1772, %v1775
    %v1779 = vsub.f32 %v1773, %v1776
    %v1780 = vmul.f32 %v66, %v1678
    %v1781 = vmul.f32 %v67, %v1679
    %v1782 = vmul.f32 %v68, %v1680
    %v1783 = vmul.f32 %v70, %v1553
    %v1784 = vmul.f32 %v71, %v1554
    %v1785 = vmul.f32 %v72, %v1555
    %v1786 = vsub.f32 %v1780, %v1783
    %v1787 = vsub.f32 %v1781, %v1784
    %v1788 = vsub.f32 %v1782, %v1785
    %v1789 = vmul.f32 %v74, %v1777
    %v1790 = vmul.f32 %v75, %v1778
    %v1791 = vmul.f32 %v76, %v1779
    %v1792 = vadd.f32 %v1786, %v1789
    %v1793 = vadd.f32 %v1787, %v1790
    %v1794 = vadd.f32 %v1788, %v1791
    %v1795 = vld [vmem:[#allocation4 + $0xd] sm:$0x1]
    %v1796 = vlaneseq
    %v1797 = vshrl.u32 %v1796, 7
    %v1798 = vsub.s32 0, %v1797
    %v1799 = vrot.slane %v1795, %v1798
    %v1800 = vmul.f32 %v99, %v1799
    %v1801 = vmul.f32 %v100, %v1799
    %v1802 = vmul.f32 %v101, %v1799
    %v1803 = vadd.f32 %v1792, %v1800
    %v1804 = vadd.f32 %v1793, %v1801
    %v1805 = vadd.f32 %v1794, %v1802
    %v1806 = vmul.f32 %v1803, %v77
    %v1807 = vmul.f32 %v1804, %v78
    %v1808 = vmul.f32 %v1805, %v79
    %v1809 = vmul.f32 %v1803, %v80
    %v1810 = vmul.f32 %v1804, %v81
    %v1811 = vmul.f32 %v1805, %v82
    %v1812 = vmul.f32 %v1803, %v83
    %v1813 = vmul.f32 %v1804, %v84
    %v1814 = vmul.f32 %v1805, %v85
    %v1815 = vmul.f32 %v1803, %v86
    %v1816 = vmul.f32 %v1804, %v87
    %v1817 = vmul.f32 %v1805, %v88
    %v1818 = vadd.f32 %v1806, %v1807
    %v1819 = vadd.f32 %v1818, %v1808
    %v1820 = vrot.slane %v1819, 4
    %v1821 = vadd.f32 %v1819, %v1820
    %v1822 = vrot.slane %v1821, 2
    %v1823 = vadd.f32 %v1821, %v1822
    %v1824 = vrot.slane %v1823, 1
    %v1825 = vadd.f32 %v1823, %v1824
    %v1826 = vadd.f32 %v1809, %v1810
    %v1827 = vadd.f32 %v1826, %v1811
    %v1828 = vrot.slane %v1827, 4
    %v1829 = vadd.f32 %v1827, %v1828
    %v1830 = vrot.slane %v1829, 2
    %v1831 = vadd.f32 %v1829, %v1830
    %v1832 = vrot.slane %v1831, 1
    %v1833 = vadd.f32 %v1831, %v1832
    %v1834 = vadd.f32 %v1812, %v1813
    %v1835 = vadd.f32 %v1834, %v1814
    %v1836 = vrot.slane %v1835, 4
    %v1837 = vadd.f32 %v1835, %v1836
    %v1838 = vrot.slane %v1837, 2
    %v1839 = vadd.f32 %v1837, %v1838
    %v1840 = vrot.slane %v1839, 1
    %v1841 = vadd.f32 %v1839, %v1840
    %v1842 = vadd.f32 %v1815, %v1816
    %v1843 = vadd.f32 %v1842, %v1817
    %v1844 = vrot.slane %v1843, 4
    %v1845 = vadd.f32 %v1843, %v1844
    %v1846 = vrot.slane %v1845, 2
    %v1847 = vadd.f32 %v1845, %v1846
    %v1848 = vrot.slane %v1847, 1
    %v1849 = vadd.f32 %v1847, %v1848
    %v1854 = vsel %vm225, %v1833, %v1825
    %v1855 = vsel %vm227, %v1841, %v1854
    %v1856 = vsel %vm229, %v1849, %v1855
    %v1858 = vsel %vm232, %v1856, 0.0
    %1859 = vadd.xlane.f32.xlu0 %v1858
    %v1860 = vpop.xlane.xlu0 %1859
    %vm1861 = vcmp.eq.s32.totalorder %v103, 13
    %v1862 = vsel %vm1861, 1, 0
    %v1863 = vcvt.s32.f32 %v1862
    %v1864 = vmul.f32 %v1860, %v1863
    %v1865 = vadd.f32 %v1740, %v1864
    %v1866 = vrot.slane %v1803, 7
    %v1867 = vrot.slane %v1804, 7
    %v1868 = vrot.slane %v1805, 7
    %v1869 = vsel %vm113, %v1867, %v1868
    %v1870 = vsel %vm113, %v1866, %v1867
    %v1871 = vsel %vm113, %v1868, %v1866
    %v1872 = vrot.slane %v1803, 1
    %v1873 = vrot.slane %v1804, 1
    %v1874 = vrot.slane %v1805, 1
    %v1875 = vsel %vm120, %v1873, %v1874
    %v1876 = vsel %vm120, %v1872, %v1873
    %v1877 = vsel %vm120, %v1874, %v1872
    %1878 = vrot.lane.b32.xlu0 %v1803, 1
    %v1879 = vpop.permute.xlu0 %1878
    %1880 = vrot.lane.b32.xlu0 %v1804, 1
    %v1881 = vpop.permute.xlu0 %1880
    %1882 = vrot.lane.b32.xlu0 %v1805, 1
    %v1883 = vpop.permute.xlu0 %1882
    %1884 = vrot.lane.b32.xlu0 %v1803, 127
    %v1885 = vpop.permute.xlu0 %1884
    %1886 = vrot.lane.b32.xlu0 %v1804, 127
    %v1887 = vpop.permute.xlu0 %1886
    %1888 = vrot.lane.b32.xlu0 %v1805, 127
    %v1889 = vpop.permute.xlu0 %1888
    %v1890 = vadd.f32 %v1871, %v1876
    %v1891 = vadd.f32 %v1870, %v1875
    %v1892 = vadd.f32 %v1869, %v1877
    %v1893 = vadd.f32 %v1879, %v1885
    %v1894 = vadd.f32 %v1881, %v1887
    %v1895 = vadd.f32 %v1883, %v1889
    %v1896 = vadd.f32 %v1890, %v1893
    %v1897 = vadd.f32 %v1891, %v1894
    %v1898 = vadd.f32 %v1892, %v1895
    %v1899 = vmul.f32 %v1803, 4.0
    %v1900 = vmul.f32 %v1804, 4.0
    %v1901 = vmul.f32 %v1805, 4.0
    %v1902 = vsub.f32 %v1896, %v1899
    %v1903 = vsub.f32 %v1897, %v1900
    %v1904 = vsub.f32 %v1898, %v1901
    %v1905 = vmul.f32 %v66, %v1803
    %v1906 = vmul.f32 %v67, %v1804
    %v1907 = vmul.f32 %v68, %v1805
    %v1908 = vmul.f32 %v70, %v1678
    %v1909 = vmul.f32 %v71, %v1679
    %v1910 = vmul.f32 %v72, %v1680
    %v1911 = vsub.f32 %v1905, %v1908
    %v1912 = vsub.f32 %v1906, %v1909
    %v1913 = vsub.f32 %v1907, %v1910
    %v1914 = vmul.f32 %v74, %v1902
    %v1915 = vmul.f32 %v75, %v1903
    %v1916 = vmul.f32 %v76, %v1904
    %v1917 = vadd.f32 %v1911, %v1914
    %v1918 = vadd.f32 %v1912, %v1915
    %v1919 = vadd.f32 %v1913, %v1916
    %v1920 = vld [vmem:[#allocation4 + $0xe] sm:$0x1]
    %v1921 = vlaneseq
    %v1922 = vshrl.u32 %v1921, 7
    %v1923 = vsub.s32 0, %v1922
    %v1924 = vrot.slane %v1920, %v1923
    %v1925 = vmul.f32 %v99, %v1924
    %v1926 = vmul.f32 %v100, %v1924
    %v1927 = vmul.f32 %v101, %v1924
    %v1928 = vadd.f32 %v1917, %v1925
    %v1929 = vadd.f32 %v1918, %v1926
    %v1930 = vadd.f32 %v1919, %v1927
    %v1931 = vmul.f32 %v1928, %v77
    %v1932 = vmul.f32 %v1929, %v78
    %v1933 = vmul.f32 %v1930, %v79
    %v1934 = vmul.f32 %v1928, %v80
    %v1935 = vmul.f32 %v1929, %v81
    %v1936 = vmul.f32 %v1930, %v82
    %v1937 = vmul.f32 %v1928, %v83
    %v1938 = vmul.f32 %v1929, %v84
    %v1939 = vmul.f32 %v1930, %v85
    %v1940 = vmul.f32 %v1928, %v86
    %v1941 = vmul.f32 %v1929, %v87
    %v1942 = vmul.f32 %v1930, %v88
    %v1943 = vadd.f32 %v1931, %v1932
    %v1944 = vadd.f32 %v1943, %v1933
    %v1945 = vrot.slane %v1944, 4
    %v1946 = vadd.f32 %v1944, %v1945
    %v1947 = vrot.slane %v1946, 2
    %v1948 = vadd.f32 %v1946, %v1947
    %v1949 = vrot.slane %v1948, 1
    %v1950 = vadd.f32 %v1948, %v1949
    %v1951 = vadd.f32 %v1934, %v1935
    %v1952 = vadd.f32 %v1951, %v1936
    %v1953 = vrot.slane %v1952, 4
    %v1954 = vadd.f32 %v1952, %v1953
    %v1955 = vrot.slane %v1954, 2
    %v1956 = vadd.f32 %v1954, %v1955
    %v1957 = vrot.slane %v1956, 1
    %v1958 = vadd.f32 %v1956, %v1957
    %v1959 = vadd.f32 %v1937, %v1938
    %v1960 = vadd.f32 %v1959, %v1939
    %v1961 = vrot.slane %v1960, 4
    %v1962 = vadd.f32 %v1960, %v1961
    %v1963 = vrot.slane %v1962, 2
    %v1964 = vadd.f32 %v1962, %v1963
    %v1965 = vrot.slane %v1964, 1
    %v1966 = vadd.f32 %v1964, %v1965
    %v1967 = vadd.f32 %v1940, %v1941
    %v1968 = vadd.f32 %v1967, %v1942
    %v1969 = vrot.slane %v1968, 4
    %v1970 = vadd.f32 %v1968, %v1969
    %v1971 = vrot.slane %v1970, 2
    %v1972 = vadd.f32 %v1970, %v1971
    %v1973 = vrot.slane %v1972, 1
    %v1974 = vadd.f32 %v1972, %v1973
    %v1979 = vsel %vm225, %v1958, %v1950
    %v1980 = vsel %vm227, %v1966, %v1979
    %v1981 = vsel %vm229, %v1974, %v1980
    %v1983 = vsel %vm232, %v1981, 0.0
    %1984 = vadd.xlane.f32.xlu0 %v1983
    %v1985 = vpop.xlane.xlu0 %1984
    %vm1986 = vcmp.eq.s32.totalorder %v103, 14
    %v1987 = vsel %vm1986, 1, 0
    %v1988 = vcvt.s32.f32 %v1987
    %v1989 = vmul.f32 %v1985, %v1988
    %v1990 = vadd.f32 %v1865, %v1989
    %v1991 = vrot.slane %v1928, 7
    %v1992 = vrot.slane %v1929, 7
    %v1993 = vrot.slane %v1930, 7
    %v1994 = vsel %vm113, %v1992, %v1993
    %v1995 = vsel %vm113, %v1991, %v1992
    %v1996 = vsel %vm113, %v1993, %v1991
    %v1997 = vrot.slane %v1928, 1
    %v1998 = vrot.slane %v1929, 1
    %v1999 = vrot.slane %v1930, 1
    %v2000 = vsel %vm120, %v1998, %v1999
    %v2001 = vsel %vm120, %v1997, %v1998
    %v2002 = vsel %vm120, %v1999, %v1997
    %2003 = vrot.lane.b32.xlu0 %v1928, 1
    %v2004 = vpop.permute.xlu0 %2003
    %2005 = vrot.lane.b32.xlu0 %v1929, 1
    %v2006 = vpop.permute.xlu0 %2005
    %2007 = vrot.lane.b32.xlu0 %v1930, 1
    %v2008 = vpop.permute.xlu0 %2007
    %2009 = vrot.lane.b32.xlu0 %v1928, 127
    %v2010 = vpop.permute.xlu0 %2009
    %2011 = vrot.lane.b32.xlu0 %v1929, 127
    %v2012 = vpop.permute.xlu0 %2011
    %2013 = vrot.lane.b32.xlu0 %v1930, 127
    %v2014 = vpop.permute.xlu0 %2013
    %v2015 = vadd.f32 %v1996, %v2001
    %v2016 = vadd.f32 %v1995, %v2000
    %v2017 = vadd.f32 %v1994, %v2002
    %v2018 = vadd.f32 %v2004, %v2010
    %v2019 = vadd.f32 %v2006, %v2012
    %v2020 = vadd.f32 %v2008, %v2014
    %v2021 = vadd.f32 %v2015, %v2018
    %v2022 = vadd.f32 %v2016, %v2019
    %v2023 = vadd.f32 %v2017, %v2020
    %v2024 = vmul.f32 %v1928, 4.0
    %v2025 = vmul.f32 %v1929, 4.0
    %v2026 = vmul.f32 %v1930, 4.0
    %v2027 = vsub.f32 %v2021, %v2024
    %v2028 = vsub.f32 %v2022, %v2025
    %v2029 = vsub.f32 %v2023, %v2026
    %v2030 = vmul.f32 %v66, %v1928
    %v2031 = vmul.f32 %v67, %v1929
    %v2032 = vmul.f32 %v68, %v1930
    %v2033 = vmul.f32 %v70, %v1803
    %v2034 = vmul.f32 %v71, %v1804
    %v2035 = vmul.f32 %v72, %v1805
    %v2036 = vsub.f32 %v2030, %v2033
    %v2037 = vsub.f32 %v2031, %v2034
    %v2038 = vsub.f32 %v2032, %v2035
    %v2039 = vmul.f32 %v74, %v2027
    %v2040 = vmul.f32 %v75, %v2028
    %v2041 = vmul.f32 %v76, %v2029
    %v2042 = vadd.f32 %v2036, %v2039
    %v2043 = vadd.f32 %v2037, %v2040
    %v2044 = vadd.f32 %v2038, %v2041
    %v2045 = vld [vmem:[#allocation4 + $0xf] sm:$0x1]
    %v2046 = vlaneseq
    %v2047 = vshrl.u32 %v2046, 7
    %v2048 = vsub.s32 0, %v2047
    %v2049 = vrot.slane %v2045, %v2048
    %v2050 = vmul.f32 %v99, %v2049
    %v2051 = vmul.f32 %v100, %v2049
    %v2052 = vmul.f32 %v101, %v2049
    %v2053 = vadd.f32 %v2042, %v2050
    %v2054 = vadd.f32 %v2043, %v2051
    %v2055 = vadd.f32 %v2044, %v2052
    %v2056 = vmul.f32 %v2053, %v77
    %v2057 = vmul.f32 %v2054, %v78
    %v2058 = vmul.f32 %v2055, %v79
    %v2059 = vmul.f32 %v2053, %v80
    %v2060 = vmul.f32 %v2054, %v81
    %v2061 = vmul.f32 %v2055, %v82
    %v2062 = vmul.f32 %v2053, %v83
    %v2063 = vmul.f32 %v2054, %v84
    %v2064 = vmul.f32 %v2055, %v85
    %v2065 = vmul.f32 %v2053, %v86
    %v2066 = vmul.f32 %v2054, %v87
    %v2067 = vmul.f32 %v2055, %v88
    %v2068 = vadd.f32 %v2056, %v2057
    %v2069 = vadd.f32 %v2068, %v2058
    %v2070 = vrot.slane %v2069, 4
    %v2071 = vadd.f32 %v2069, %v2070
    %v2072 = vrot.slane %v2071, 2
    %v2073 = vadd.f32 %v2071, %v2072
    %v2074 = vrot.slane %v2073, 1
    %v2075 = vadd.f32 %v2073, %v2074
    %v2076 = vadd.f32 %v2059, %v2060
    %v2077 = vadd.f32 %v2076, %v2061
    %v2078 = vrot.slane %v2077, 4
    %v2079 = vadd.f32 %v2077, %v2078
    %v2080 = vrot.slane %v2079, 2
    %v2081 = vadd.f32 %v2079, %v2080
    %v2082 = vrot.slane %v2081, 1
    %v2083 = vadd.f32 %v2081, %v2082
    %v2084 = vadd.f32 %v2062, %v2063
    %v2085 = vadd.f32 %v2084, %v2064
    %v2086 = vrot.slane %v2085, 4
    %v2087 = vadd.f32 %v2085, %v2086
    %v2088 = vrot.slane %v2087, 2
    %v2089 = vadd.f32 %v2087, %v2088
    %v2090 = vrot.slane %v2089, 1
    %v2091 = vadd.f32 %v2089, %v2090
    %v2092 = vadd.f32 %v2065, %v2066
    %v2093 = vadd.f32 %v2092, %v2067
    %v2094 = vrot.slane %v2093, 4
    %v2095 = vadd.f32 %v2093, %v2094
    %v2096 = vrot.slane %v2095, 2
    %v2097 = vadd.f32 %v2095, %v2096
    %v2098 = vrot.slane %v2097, 1
    %v2099 = vadd.f32 %v2097, %v2098
    %v2104 = vsel %vm225, %v2083, %v2075
    %v2105 = vsel %vm227, %v2091, %v2104
    %v2106 = vsel %vm229, %v2099, %v2105
    %v2108 = vsel %vm232, %v2106, 0.0
    %2109 = vadd.xlane.f32.xlu0 %v2108
    %v2110 = vpop.xlane.xlu0 %2109
    %vm2111 = vcmp.eq.s32.totalorder %v103, 15
    %v2112 = vsel %vm2111, 1, 0
    %v2113 = vcvt.s32.f32 %v2112
    %v2114 = vmul.f32 %v2110, %v2113
    %v2115 = vadd.f32 %v1990, %v2114
    %2116 = vst [vmem:[#allocation2] sm:$0xff] %v2053
    %2117 = vst [vmem:[#allocation2 + $0x8] sm:$0xff] %v2054
    %2118 = vst [vmem:[#allocation2 + $0x10] sm:$0xff] %v2055
    %2119 = vst [vmem:[#allocation3] sm:$0xff] %v1928
    %2120 = vst [vmem:[#allocation3 + $0x8] sm:$0xff] %v1929
    %2121 = vst [vmem:[#allocation3 + $0x10] sm:$0xff] %v1930
    %v2122 = vmul.f32 %v2115, %v2115
    %vm2123 = vcmask 125952
    %2124 = vst.msk [vmem:[#allocation10] sm:$0xf] %vm2123, %v2122
    // Predicated region
    $region30: #{tpu_custom_call.1} parent=1 // pred_check
      _
    $region31: #{tpu_custom_call.1} parent=1 // pred_check_branch
      %2126 = sbr.rel (0) target = $region33
    $region32: #{tpu_custom_call.1} parent=1 // pred_region
      %s2128 = ssub.s32 64, 64
      %2129 = vsyncadd [#allocation6], %s2128
      %s2131 = sshll.u32 [#allocation10], 4
      %s2132 = int_to_ptr.vmem [resolvable:$true] %s2131
      %2134 = dma.vmem_to_hbm [thread:$0]  %s2132, 64, %s3, [#allocation6]
    $region33: #{tpu_custom_call.1} parent=1 // pred_fallthru
      _
    // Predicated region
    $region34: #{tpu_custom_call.1} parent=1 // pred_check
      _
    $region35: #{tpu_custom_call.1} parent=1 // pred_check_branch
      %2136 = sbr.rel (0) target = $region37
    $region36: #{tpu_custom_call.1} parent=1 // pred_region
      %2137 = dma.done [#allocation6], 64
    $region37: #{tpu_custom_call.1} parent=1 // pred_fallthru
      _
    %2138 = vsyncpa [#allocation5], 1
    %2139 = vsyncpa [#allocation8], 1
    %2140 = vsyncpa [#allocation6], 1

</llo_original>
